<compile_context>
chip_gen: v5e
topology: v5e:2x2
jax: 0.10.0
libtpu: 0.0.40
codegen_flags: <defaults>
</compile_context>

<pallas_src>
import functools
import math

import jax
import jax.numpy as jnp
import numpy as np
from jax.experimental import pallas as pl
from jax.experimental.pallas import tpu as pltpu


def _round_up(x, m):
    return ((x + m - 1) // m) * m


# ------------------------------ Pallas kernel ------------------------------ #

def _tokenizer_kernel(ids_ref, lap_ref, order_ref, keep_ref, add_ref,
                      table_ref, lapw_ref, ordw_ref, out_ref, *, vocab):
    """Fused per-token feature assembly for a tile of `tm` flattened tokens.

    ids_ref   : (tm, F)  int32   vocab ids of the token's features (zero-row id padded)
    lap_ref   : (tm, 2K) float32 gathered laplacian index embedding
    order_ref : (tm, 1)  int32   type id (1 = node token, 0 = edge token)
    keep_ref  : (tm, 1)  float32 1.0 for non-padding tokens (incl. specials)
    add_ref   : (tm, 1)  float32 1.0 for regular tokens (lap/type additions apply)
    table_ref : (V, D)   float32 combined embedding table (atoms|edges|graph|null|0)
    lapw_ref  : (2K, D)  float32 lap_encoder weight, pre-transposed
    ordw_ref  : (2, D)   float32 order_encoder embedding table
    """
    ids = ids_ref[...]                                            # (tm, F) int32
    tm = ids.shape[0]

    # One-hot counts over the combined vocabulary; counts @ table reproduces
    # Embedding(ids).sum(-2) (and the special / zero rows) in a single MXU call.
    iota = jax.lax.broadcasted_iota(jnp.int32, (tm, vocab), 1)
    counts = jnp.zeros((tm, vocab), jnp.float32)
    for f in range(ids.shape[1]):                                 # static, tiny
        counts = counts + (ids[:, f:f + 1] == iota).astype(jnp.float32)

    base = jnp.dot(counts, table_ref[...],
                   preferred_element_type=jnp.float32,
                   precision=jax.lax.Precision.HIGHEST)           # (tm, D)
    lap_add = jnp.dot(lap_ref[...], lapw_ref[...],
                      preferred_element_type=jnp.float32,
                      precision=jax.lax.Precision.HIGHEST)        # (tm, D)

    ordw = ordw_ref[...]                                          # (2, D)
    is_node = (order_ref[...] == 1).astype(jnp.float32)           # (tm, 1)
    type_add = is_node * ordw[1:2, :] + (1.0 - is_node) * ordw[0:1, :]

    out = (base + add_ref[...] * (lap_add + type_add)) * keep_ref[...]
    out_ref[...] = out.astype(out_ref.dtype)


# ----------------------- host-side ragged -> padded prep -------------------- #
# TODO(synk): get_batch / get_index_embed are data-dependent ragged scatter-gathers
#             over variable-length graphs; no clean Pallas equivalent, done on host.

def _build_token_inputs(node_data, edge_index, edge_data, lap_eigvec,
                        node_num, edge_num, num_atoms, num_edge_types, lap_k):
    node_data = np.asarray(node_data)
    edge_data = np.asarray(edge_data)
    edge_index = np.asarray(edge_index)
    eig = np.asarray(lap_eigvec, dtype=np.float32)

    lap_dim = eig.shape[1]
    if lap_k > lap_dim:
        eig = np.pad(eig, ((0, 0), (0, lap_k - lap_dim)))
    else:
        eig = eig[:, :lap_k]

    B = len(node_num)
    max_len = max(int(n) + int(e) for n, e in zip(node_num, edge_num))
    Tp = max_len + 2                      # graph token + null token prepended
    Fn = node_data.shape[1]
    Fe = edge_data.shape[1]
    Fm = max(Fn, Fe, 1)

    graph_id = num_atoms + num_edge_types
    null_id = graph_id + 1
    zero_id = null_id + 1                 # row of zeros in the combined table

    token_ids = np.full((B, Tp, Fm), zero_id, np.int32)
    token_ids[:, 0, 0] = graph_id
    token_ids[:, 1, 0] = null_id
    lap_ie = np.zeros((B, Tp, 2 * lap_k), np.float32)
    order = np.zeros((B, Tp), np.int32)
    keep = np.zeros((B, Tp), np.float32)
    add = np.zeros((B, Tp), np.float32)
    keep[:, :2] = 1.0                     # special tokens are kept, no additions

    padded_index = np.zeros((B, max_len, 2), np.int32)
    padded_node_mask = np.zeros((B, max_len), bool)
    padded_edge_mask = np.zeros((B, max_len), bool)
    padding_mask = np.zeros((B, Tp), bool)

    n_off = 0
    e_off = 0
    for b in range(B):
        n = int(node_num[b])
        e = int(edge_num[b])
        nd = node_data[n_off:n_off + n]
        ed = edge_data[e_off:e_off + e]
        ei = edge_index[:, e_off:e_off + e]
        eig_b = eig[n_off:n_off + n]

        token_ids[b, 2:2 + n, :Fn] = nd
        token_ids[b, 2 + n:2 + n + e, :Fe] = ed + num_atoms

        lap_ie[b, 2:2 + n, :lap_k] = eig_b
        lap_ie[b, 2:2 + n, lap_k:] = eig_b
        lap_ie[b, 2 + n:2 + n + e, :lap_k] = eig_b[ei[0]]
        lap_ie[b, 2 + n:2 + n + e, lap_k:] = eig_b[ei[1]]

        order[b, 2:2 + n] = 1
        order[b, 2 + n:2 + n + e] = (ei[0] == ei[1]).astype(np.int32)
        keep[b, 2:2 + n + e] = 1.0
        add[b, 2:2 + n + e] = 1.0

        padded_index[b, :n, 0] = np.arange(n)
        padded_index[b, :n, 1] = np.arange(n)
        padded_index[b, n:n + e] = ei.T
        padded_node_mask[b, :n] = True
        padded_edge_mask[b, n:n + e] = True
        padding_mask[b, 2 + n + e:] = True

        n_off += n
        e_off += e

    return (token_ids, lap_ie, order, keep, add, padding_mask,
            padded_index, padded_node_mask, padded_edge_mask, Tp)


# --------------------------------- wrapper ---------------------------------- #

def graph_feature_tokenizer(batched_data, params, *, lap_node_id_k, row_tile=128):
    """Forward pass of GraphFeatureTokenizer (lap_node_id=True, type_id=True,
    rand_node_id=False, orf_node_id=False, eval mode)."""
    # TODO(synk): rand_node_id / orf_node_id branches (torch.rand ids, batched QR
    #             orthogonal random features) are disabled in this config; batched QR
    #             has no Pallas equivalent.
    # TODO(synk): lap_eig_dropout and laplacian sign-flip are training-only; eval
    #             semantics here -> identity.
    atom_table = params["atom_table"]
    edge_table = params["edge_table"]
    num_atoms, D = atom_table.shape
    num_edge_types = edge_table.shape[0]
    K2 = 2 * lap_node_id_k

    (token_ids, lap_ie, order, keep, add, padding_mask,
     padded_index, padded_node_mask, padded_edge_mask, Tp) = _build_token_inputs(
        batched_data["node_data"], batched_data["edge_index"],
        batched_data["edge_data"], batched_data["lap_eigvec"],
        batched_data["node_num"], batched_data["edge_num"],
        num_atoms, num_edge_types, lap_node_id_k)

    B = token_ids.shape[0]
    Fm = token_ids.shape[2]

    # Combined embedding table: [atoms | edges | graph | null | zero-row], padded
    # to a lane-friendly vocab size so the counts matmul is lane-dense on the MXU.
    vocab = num_atoms + num_edge_types + 3
    vocab_pad = _round_up(vocab, 128)
    zero_id = num_atoms + num_edge_types + 2
    table = jnp.zeros((vocab_pad, D), jnp.float32)
    table = table.at[:num_atoms].set(atom_table)
    table = table.at[num_atoms:num_atoms + num_edge_types].set(edge_table)
    table = table.at[num_atoms + num_edge_types].set(params["graph_token"][0])
    table = table.at[num_atoms + num_edge_types + 1].set(params["null_token"][0])

    N = B * Tp
    tm = row_tile
    Np = _round_up(N, tm)

    def rows(x, fill=0):
        x2 = np.asarray(x).reshape(N, -1)
        pad = np.full((Np - N, x2.shape[1]), fill, x2.dtype)
        return jnp.asarray(np.concatenate([x2, pad], axis=0))

    ids_rows = rows(token_ids, fill=zero_id)
    lap_rows = rows(lap_ie)
    order_rows = rows(order)
    keep_rows = rows(keep)
    add_rows = rows(add)

    grid = (Np // tm,)
    kernel = functools.partial(_tokenizer_kernel, vocab=vocab_pad)
    flops = 2 * Np * D * (vocab_pad + K2) + Np * vocab_pad * Fm + 6 * Np * D
    bytes_accessed = 4 * (Np * (Fm + K2 + 3 + D)
                          + grid[0] * (vocab_pad + K2 + 2) * D)

    out = pl.pallas_call(
        kernel,
        grid=grid,
        in_specs=[
            pl.BlockSpec((tm, Fm), lambda i: (i, 0)),          # token vocab ids
            pl.BlockSpec((tm, K2), lambda i: (i, 0)),          # lap index embed
            pl.BlockSpec((tm, 1), lambda i: (i, 0)),           # order (type id)
            pl.BlockSpec((tm, 1), lambda i: (i, 0)),           # keep mask
            pl.BlockSpec((tm, 1), lambda i: (i, 0)),           # add mask
            pl.BlockSpec((vocab_pad, D), lambda i: (0, 0)),    # combined table
            pl.BlockSpec((K2, D), lambda i: (0, 0)),           # lap_encoder W^T
            pl.BlockSpec((2, D), lambda i: (0, 0)),            # order_encoder
        ],
        out_specs=pl.BlockSpec((tm, D), lambda i: (i, 0)),
        out_shape=jax.ShapeDtypeStruct((Np, D), jnp.float32),
        compiler_params=pltpu.CompilerParams(
            dimension_semantics=("parallel",),
            vmem_limit_bytes=32 * 1024 * 1024),
        cost_estimate=pl.CostEstimate(flops=int(flops), transcendentals=0,
                                      bytes_accessed=int(bytes_accessed)),
    )(ids_rows, lap_rows, order_rows, keep_rows, add_rows,
      table, params["lap_w_t"], params["order_table"])

    padded_feature = out[:N].reshape(B, Tp, D)
    return (padded_feature,
            jnp.asarray(padding_mask),
            jnp.asarray(padded_index),
            jnp.asarray(padded_node_mask),
            jnp.asarray(padded_edge_mask))


# --------------------------- numpy reference forward ------------------------ #

def reference_forward(batched_data, params, *, lap_node_id_k):
    node_data = np.asarray(batched_data["node_data"])
    edge_data = np.asarray(batched_data["edge_data"])
    edge_index = np.asarray(batched_data["edge_index"])
    eig = np.asarray(batched_data["lap_eigvec"], np.float32)
    node_num = [int(x) for x in batched_data["node_num"]]
    edge_num = [int(x) for x in batched_data["edge_num"]]

    atom_tab = np.asarray(params["atom_table"])
    edge_tab = np.asarray(params["edge_table"])
    graph_tok = np.asarray(params["graph_token"])
    null_tok = np.asarray(params["null_token"])
    lap_w_t = np.asarray(params["lap_w_t"])
    order_tab = np.asarray(params["order_table"])
    D = atom_tab.shape[1]
    K = lap_node_id_k

    node_feature = atom_tab[node_data].sum(-2)
    edge_feature = edge_tab[edge_data].sum(-2)

    B = len(node_num)
    max_len = max(n + e for n, e in zip(node_num, edge_num))
    max_n = max(node_num)

    lap_dim = eig.shape[1]
    eigk = np.pad(eig, ((0, 0), (0, K - lap_dim))) if K > lap_dim else eig[:, :K]

    padded_feature = np.zeros((B, max_len, D), np.float32)
    padded_index = np.zeros((B, max_len, 2), np.int64)
    padding_mask = np.zeros((B, max_len), bool)
    padded_node_id = np.zeros((B, max_n, K), np.float32)

    n_off = e_off = 0
    for b in range(B):
        n, e = node_num[b], edge_num[b]
        padded_feature[b, :n] = node_feature[n_off:n_off + n]
        padded_feature[b, n:n + e] = edge_feature[e_off:e_off + e]
        padded_index[b, :n, 0] = np.arange(n)
        padded_index[b, :n, 1] = np.arange(n)
        padded_index[b, n:n + e] = edge_index[:, e_off:e_off + e].T
        padding_mask[b, n + e:] = True
        padded_node_id[b, :n] = eigk[n_off:n_off + n]
        n_off += n
        e_off += e

    lap_ie = np.zeros((B, max_len, 2 * K), np.float32)
    for b in range(B):
        lap_ie[b, :, :K] = padded_node_id[b][padded_index[b, :, 0]]
        lap_ie[b, :, K:] = padded_node_id[b][padded_index[b, :, 1]]

    feat = padded_feature + lap_ie @ lap_w_t
    order = (padded_index[..., 0] == padded_index[..., 1]).astype(np.int64)
    feat = feat + order_tab[order]

    graph = np.broadcast_to(graph_tok[0], (B, 1, D))
    null = np.broadcast_to(null_tok[0], (B, 1, D))
    feat = np.concatenate([graph, null, feat], axis=1)
    pmask = np.concatenate([np.zeros((B, 2), bool), padding_mask], axis=1)
    feat = np.where(pmask[..., None], np.float32(0.0), feat)
    return feat.astype(np.float32), pmask


# ------------------------------------ test ---------------------------------- #

if __name__ == "__main__":
    hidden_dim = 128           # lane-dense output width
    lap_k = 8
    num_atoms = 64
    num_edge_types = 32
    n_layers = 12
    node_num = [5, 3]
    edge_num = [6, 4]
    Fn, Fe = 3, 2
    lap_dim = 6                # < lap_k -> exercises the pad branch
    sumN, sumE = sum(node_num), sum(edge_num)

    key = jax.random.PRNGKey(0)
    keys = jax.random.split(key, 12)
    node_data = jax.random.randint(keys[0], (sumN, Fn), 1, num_atoms, dtype=jnp.int32)
    edge_data = jax.random.randint(keys[1], (sumE, Fe), 1, num_edge_types, dtype=jnp.int32)
    lap_eigvec = jax.random.normal(keys[2], (sumN, lap_dim), jnp.float32)
    ei_parts = []
    for i, (n, e) in enumerate(zip(node_num, edge_num)):
        ei_parts.append(jax.random.randint(keys[3 + i], (2, e), 0, n, dtype=jnp.int32))
    edge_index = jnp.concatenate(ei_parts, axis=1)

    params = {
        "atom_table": 0.02 * jax.random.normal(keys[6], (num_atoms, hidden_dim), jnp.float32),
        "edge_table": 0.02 * jax.random.normal(keys[7], (num_edge_types, hidden_dim), jnp.float32),
        "graph_token": 0.02 * jax.random.normal(keys[8], (1, hidden_dim), jnp.float32),
        "null_token": 0.02 * jax.random.normal(keys[9], (1, hidden_dim), jnp.float32),
        "order_table": 0.02 * jax.random.normal(keys[10], (2, hidden_dim), jnp.float32),
        "lap_w_t": (0.02 / math.sqrt(n_layers))
                   * jax.random.normal(keys[11], (2 * lap_k, hidden_dim), jnp.float32),
    }

    batched_data = {
        "node_data": node_data, "edge_index": edge_index, "edge_data": edge_data,
        "lap_eigvec": lap_eigvec, "node_num": node_num, "edge_num": edge_num,
    }

    feat, padding_mask, padded_index, node_mask, edge_mask = graph_feature_tokenizer(
        batched_data, params, lap_node_id_k=lap_k)
    feat = jax.block_until_ready(feat)
    padding_mask = jax.block_until_ready(padding_mask)

    ref_feat, ref_mask = reference_forward(batched_data, params, lap_node_id_k=lap_k)
    np.testing.assert_allclose(np.asarray(feat), ref_feat, rtol=2e-5, atol=1e-5)
    np.testing.assert_array_equal(np.asarray(padding_mask), ref_mask)
    print("KERNEL_OK")
</pallas_src>

<mosaic_0001>
module attributes {stable_mosaic.version = 11 : i64} {
  func.func @_tokenizer_kernel(%arg0: i32, %arg1: memref<128x3xi32, #tpu.memory_space<vmem>>, %arg2: memref<128x16xf32, #tpu.memory_space<vmem>>, %arg3: memref<128x1xi32, #tpu.memory_space<vmem>>, %arg4: memref<128x1xf32, #tpu.memory_space<vmem>>, %arg5: memref<128x1xf32, #tpu.memory_space<vmem>>, %arg6: memref<128x128xf32, #tpu.memory_space<vmem>>, %arg7: memref<16x128xf32, #tpu.memory_space<vmem>>, %arg8: memref<2x128xf32, #tpu.memory_space<vmem>>, %arg9: memref<128x128xf32, #tpu.memory_space<vmem>>) attributes {dimension_semantics = [#tpu.dimension_semantics<parallel>], iteration_bounds = array<i64: 1>, scalar_prefetch = 0 : i64, scratch_operands = 0 : i64, tpu.core_type = #tpu.core_type<tc>, window_params = [{transform_indices = @transform_0, window_bounds = array<i64: 128, 3>}, {transform_indices = @transform_1, window_bounds = array<i64: 128, 16>}, {transform_indices = @transform_2, window_bounds = array<i64: 128, 1>}, {transform_indices = @transform_3, window_bounds = array<i64: 128, 1>}, {transform_indices = @transform_4, window_bounds = array<i64: 128, 1>}, {pipeline_mode = #tpu.pipeline_mode<synchronous>, transform_indices = @transform_5, window_bounds = array<i64: 128, 128>}, {pipeline_mode = #tpu.pipeline_mode<synchronous>, transform_indices = @transform_6, window_bounds = array<i64: 16, 128>}, {pipeline_mode = #tpu.pipeline_mode<synchronous>, transform_indices = @transform_7, window_bounds = array<i64: 2, 128>}, {transform_indices = @transform_8, window_bounds = array<i64: 128, 128>}]} {
    %c0 = arith.constant 0 : index
    %c0_0 = arith.constant 0 : index
    %0 = vector.load %arg1[%c0, %c0_0] : memref<128x3xi32, #tpu.memory_space<vmem>>, vector<128x3xi32>
    %1 = tpu.iota {dimensions = array<i32: 1>} : vector<128x128xi32>
    %cst = arith.constant 0.000000e+00 : f32
    %2 = vector.broadcast %cst : f32 to vector<128x128xf32>
    %3 = vector.extract_strided_slice %0 {offsets = [0, 0], sizes = [128, 1], strides = [1, 1]} : vector<128x3xi32> to vector<128x1xi32>
    %4 = vector.broadcast %3 : vector<128x1xi32> to vector<128x128xi32>
    %5 = arith.cmpi eq, %4, %1 : vector<128x128xi32>
    %6 = arith.extui %5 : vector<128x128xi1> to vector<128x128xi32>
    %7 = arith.sitofp %6 : vector<128x128xi32> to vector<128x128xf32>
    %8 = arith.addf %2, %7 : vector<128x128xf32>
    %9 = vector.extract_strided_slice %0 {offsets = [0, 1], sizes = [128, 1], strides = [1, 1]} : vector<128x3xi32> to vector<128x1xi32>
    %10 = vector.broadcast %9 : vector<128x1xi32> to vector<128x128xi32>
    %11 = arith.cmpi eq, %10, %1 : vector<128x128xi32>
    %12 = arith.extui %11 : vector<128x128xi1> to vector<128x128xi32>
    %13 = arith.sitofp %12 : vector<128x128xi32> to vector<128x128xf32>
    %14 = arith.addf %8, %13 : vector<128x128xf32>
    %15 = vector.extract_strided_slice %0 {offsets = [0, 2], sizes = [128, 1], strides = [1, 1]} : vector<128x3xi32> to vector<128x1xi32>
    %16 = vector.broadcast %15 : vector<128x1xi32> to vector<128x128xi32>
    %17 = arith.cmpi eq, %16, %1 : vector<128x128xi32>
    %18 = arith.extui %17 : vector<128x128xi1> to vector<128x128xi32>
    %19 = arith.sitofp %18 : vector<128x128xi32> to vector<128x128xf32>
    %20 = arith.addf %14, %19 : vector<128x128xf32>
    %c0_1 = arith.constant 0 : index
    %c0_2 = arith.constant 0 : index
    %21 = vector.load %arg6[%c0_1, %c0_2] : memref<128x128xf32, #tpu.memory_space<vmem>>, vector<128x128xf32>
    %cst_3 = arith.constant dense<0.000000e+00> : vector<128x128xf32>
    %22 = tpu.matmul %20, %21, %cst_3 {dimension_numbers = #tpu.dot_dimension_numbers<[1], [0], [0], [1], [0, 0, 1, 1], [], []>, precision = #tpu.contract_precision<fp32>} : vector<128x128xf32>, vector<128x128xf32>, vector<128x128xf32> -> vector<128x128xf32>
    %c0_4 = arith.constant 0 : index
    %c0_5 = arith.constant 0 : index
    %23 = vector.load %arg2[%c0_4, %c0_5] : memref<128x16xf32, #tpu.memory_space<vmem>>, vector<128x16xf32>
    %c0_6 = arith.constant 0 : index
    %c0_7 = arith.constant 0 : index
    %24 = vector.load %arg7[%c0_6, %c0_7] : memref<16x128xf32, #tpu.memory_space<vmem>>, vector<16x128xf32>
    %cst_8 = arith.constant dense<0.000000e+00> : vector<128x128xf32>
    %25 = tpu.matmul %23, %24, %cst_8 {dimension_numbers = #tpu.dot_dimension_numbers<[1], [0], [0], [1], [0, 0, 1, 1], [], []>, precision = #tpu.contract_precision<fp32>} : vector<128x16xf32>, vector<16x128xf32>, vector<128x128xf32> -> vector<128x128xf32>
    %c0_9 = arith.constant 0 : index
    %c0_10 = arith.constant 0 : index
    %26 = vector.load %arg8[%c0_9, %c0_10] : memref<2x128xf32, #tpu.memory_space<vmem>>, vector<2x128xf32>
    %c0_11 = arith.constant 0 : index
    %c0_12 = arith.constant 0 : index
    %27 = vector.load %arg3[%c0_11, %c0_12] : memref<128x1xi32, #tpu.memory_space<vmem>>, vector<128x1xi32>
    %c1_i32 = arith.constant 1 : i32
    %28 = vector.broadcast %c1_i32 : i32 to vector<128x1xi32>
    %29 = arith.cmpi eq, %27, %28 : vector<128x1xi32>
    %30 = arith.extui %29 : vector<128x1xi1> to vector<128x1xi32>
    %31 = arith.sitofp %30 : vector<128x1xi32> to vector<128x1xf32>
    %32 = vector.extract_strided_slice %26 {offsets = [1, 0], sizes = [1, 128], strides = [1, 1]} : vector<2x128xf32> to vector<1x128xf32>
    %33 = vector.broadcast %31 : vector<128x1xf32> to vector<128x128xf32>
    %34 = vector.broadcast %32 : vector<1x128xf32> to vector<128x128xf32>
    %35 = arith.mulf %33, %34 : vector<128x128xf32>
    %cst_13 = arith.constant 1.000000e+00 : f32
    %36 = vector.broadcast %cst_13 : f32 to vector<128x1xf32>
    %37 = arith.subf %36, %31 : vector<128x1xf32>
    %38 = vector.extract_strided_slice %26 {offsets = [0, 0], sizes = [1, 128], strides = [1, 1]} : vector<2x128xf32> to vector<1x128xf32>
    %39 = vector.broadcast %37 : vector<128x1xf32> to vector<128x128xf32>
    %40 = vector.broadcast %38 : vector<1x128xf32> to vector<128x128xf32>
    %41 = arith.mulf %39, %40 : vector<128x128xf32>
    %42 = arith.addf %35, %41 : vector<128x128xf32>
    %c0_14 = arith.constant 0 : index
    %c0_15 = arith.constant 0 : index
    %43 = vector.load %arg5[%c0_14, %c0_15] : memref<128x1xf32, #tpu.memory_space<vmem>>, vector<128x1xf32>
    %44 = arith.addf %25, %42 : vector<128x128xf32>
    %45 = vector.broadcast %43 : vector<128x1xf32> to vector<128x128xf32>
    %46 = arith.mulf %45, %44 : vector<128x128xf32>
    %47 = arith.addf %22, %46 : vector<128x128xf32>
    %c0_16 = arith.constant 0 : index
    %c0_17 = arith.constant 0 : index
    %48 = vector.load %arg4[%c0_16, %c0_17] : memref<128x1xf32, #tpu.memory_space<vmem>>, vector<128x1xf32>
    %49 = vector.broadcast %48 : vector<128x1xf32> to vector<128x128xf32>
    %50 = arith.mulf %47, %49 : vector<128x128xf32>
    %c0_18 = arith.constant 0 : index
    %c0_19 = arith.constant 0 : index
    %51 = vector.load %arg9[%c0_18, %c0_19] : memref<128x128xf32, #tpu.memory_space<vmem>>, vector<128x128xf32>
    tpu.vector_store %arg9[%c0_18, %c0_19], %50 {strides = array<i32>} : memref<128x128xf32, #tpu.memory_space<vmem>>, vector<128x128xf32>,
    return
  }
  func.func @transform_0(%arg0: i32) -> (i32, i32) {
    %c0_i32 = arith.constant 0 : i32
    %c0_i32_0 = arith.constant 0 : i32
    return %arg0, %c0_i32 : i32, i32
  }
  func.func @transform_1(%arg0: i32) -> (i32, i32) {
    %c0_i32 = arith.constant 0 : i32
    %c0_i32_0 = arith.constant 0 : i32
    return %arg0, %c0_i32 : i32, i32
  }
  func.func @transform_2(%arg0: i32) -> (i32, i32) {
    %c0_i32 = arith.constant 0 : i32
    %c0_i32_0 = arith.constant 0 : i32
    return %arg0, %c0_i32 : i32, i32
  }
  func.func @transform_3(%arg0: i32) -> (i32, i32) {
    %c0_i32 = arith.constant 0 : i32
    %c0_i32_0 = arith.constant 0 : i32
    return %arg0, %c0_i32 : i32, i32
  }
  func.func @transform_4(%arg0: i32) -> (i32, i32) {
    %c0_i32 = arith.constant 0 : i32
    %c0_i32_0 = arith.constant 0 : i32
    return %arg0, %c0_i32 : i32, i32
  }
  func.func @transform_5(%arg0: i32) -> (i32, i32) {
    %c0_i32 = arith.constant 0 : i32
    %c0_i32_0 = arith.constant 0 : i32
    %c0_i32_1 = arith.constant 0 : i32
    return %c0_i32, %c0_i32_0 : i32, i32
  }
  func.func @transform_6(%arg0: i32) -> (i32, i32) {
    %c0_i32 = arith.constant 0 : i32
    %c0_i32_0 = arith.constant 0 : i32
    %c0_i32_1 = arith.constant 0 : i32
    return %c0_i32, %c0_i32_0 : i32, i32
  }
  func.func @transform_7(%arg0: i32) -> (i32, i32) {
    %c0_i32 = arith.constant 0 : i32
    %c0_i32_0 = arith.constant 0 : i32
    %c0_i32_1 = arith.constant 0 : i32
    return %c0_i32, %c0_i32_0 : i32, i32
  }
  func.func @transform_8(%arg0: i32) -> (i32, i32) {
    %c0_i32 = arith.constant 0 : i32
    %c0_i32_0 = arith.constant 0 : i32
    return %arg0, %c0_i32 : i32, i32
  }
}

</mosaic_0001>

<llo_original>
// kernel: tpu_custom_call.1
$region0: #{tpu_custom_call.1}
  #allocation0 [shape = 'u32[]', space=smem, size = 0x4, offset = 0x4, fixed_abs, tag = 'smem constant byte address 0x4 - core index']
  #allocation1 [shape = 'u32[72,128]{1,0:T(1,128)}', space=vmem, size = 0x9000, scoped, tag = 'internal scratch']
  %s0 = inlined_call_operand.vmem [shape: s32[128,3], index: 0, kind: input, shape index: {}]
  %s1 = inlined_call_operand.vmem [shape: f32[128,16], index: 1, kind: input, shape index: {}]
  %s2 = inlined_call_operand.vmem [shape: s32[128,1], index: 2, kind: input, shape index: {}]
  %s3 = inlined_call_operand.vmem [shape: f32[128,1], index: 3, kind: input, shape index: {}]
  %s4 = inlined_call_operand.vmem [shape: f32[128,1], index: 4, kind: input, shape index: {}]
  %s5 = inlined_call_operand.vmem [shape: f32[128,128], index: 5, kind: input, shape index: {}]
  %s6 = inlined_call_operand.vmem [shape: f32[16,128], index: 6, kind: input, shape index: {}]
  %s7 = inlined_call_operand.vmem [shape: f32[2,128], index: 7, kind: input, shape index: {}]
  %s8 = inlined_call_operand.hbm [shape: f32[128,128], index: 8, kind: output, shape index: {}]
  %s9 = sld [smem:[#allocation0]]
  $region42: #{tpu_custom_call.1} parent=0
    _
  %s11 = ssub.s32 1, %s9
  %s12 = scalar_select 0, %s11, %s9
  $region1: #{tpu_custom_call.1} parent=0
    #allocation2 [shape = 'u8[65536]{0}', space=vmem, size = 0x10000, scoped, tag = 'output window, operand 0, single buffered']
    #allocation3 [shape = 's32[1]{0}', space=sflag, size = 0x4, scoped, tag = 'scoped memory for tpu_custom_call.1']
    %13 = vsyncpa [#allocation3], 0
    // Predicated region
    $region2: #{tpu_custom_call.1} parent=1 // pred_check
      _
    $region3: #{tpu_custom_call.1} parent=1 // pred_check_branch
      %15 = sbr.rel (0) target = $region5
    $region4: #{tpu_custom_call.1} parent=1 // pred_region
      _
    $region5: #{tpu_custom_call.1} parent=1 // pred_fallthru
      _
    // Predicated region
    $region6: #{tpu_custom_call.1} parent=1 // pred_check
      _
    $region7: #{tpu_custom_call.1} parent=1 // pred_check_branch
      %17 = sbr.rel (0) target = $region9
    $region8: #{tpu_custom_call.1} parent=1 // pred_region
      _
    $region9: #{tpu_custom_call.1} parent=1 // pred_fallthru
      _
    // Predicated region
    $region10: #{tpu_custom_call.1} parent=1 // pred_check
      _
    $region11: #{tpu_custom_call.1} parent=1 // pred_check_branch
      %19 = sbr.rel (0) target = $region13
    $region12: #{tpu_custom_call.1} parent=1 // pred_region
      _
    $region13: #{tpu_custom_call.1} parent=1 // pred_fallthru
      _
    // Predicated region
    $region14: #{tpu_custom_call.1} parent=1 // pred_check
      _
    $region15: #{tpu_custom_call.1} parent=1 // pred_check_branch
      %21 = sbr.rel (0) target = $region17
    $region16: #{tpu_custom_call.1} parent=1 // pred_region
      _
    $region17: #{tpu_custom_call.1} parent=1 // pred_fallthru
      _
    // Predicated region
    $region18: #{tpu_custom_call.1} parent=1 // pred_check
      _
    $region19: #{tpu_custom_call.1} parent=1 // pred_check_branch
      %23 = sbr.rel (0) target = $region21
    $region20: #{tpu_custom_call.1} parent=1 // pred_region
      _
    $region21: #{tpu_custom_call.1} parent=1 // pred_fallthru
      _
    // Predicated region
    $region22: #{tpu_custom_call.1} parent=1 // pred_check
      _
    $region23: #{tpu_custom_call.1} parent=1 // pred_check_branch
      %25 = sbr.rel (0) target = $region25
    $region24: #{tpu_custom_call.1} parent=1 // pred_region
      _
    $region25: #{tpu_custom_call.1} parent=1 // pred_fallthru
      _
    // Predicated region
    $region26: #{tpu_custom_call.1} parent=1 // pred_check
      _
    $region27: #{tpu_custom_call.1} parent=1 // pred_check_branch
      %27 = sbr.rel (0) target = $region29
    $region28: #{tpu_custom_call.1} parent=1 // pred_region
      _
    $region29: #{tpu_custom_call.1} parent=1 // pred_fallthru
      _
    // Predicated region
    $region30: #{tpu_custom_call.1} parent=1 // pred_check
      _
    $region31: #{tpu_custom_call.1} parent=1 // pred_check_branch
      %29 = sbr.rel (0) target = $region33
    $region32: #{tpu_custom_call.1} parent=1 // pred_region
      _
    $region33: #{tpu_custom_call.1} parent=1 // pred_fallthru
      _
    %v30 = vld [vmem:[%s0] sm:$0xff]
    %v31 = vld [vmem:[%s0 + $0x8] sm:$0xff]
    %v32 = vld [vmem:[%s0 + $0x10] sm:$0xff]
    %v33 = vld [vmem:[%s0 + $0x18] sm:$0xff]
    %v34 = vld [vmem:[%s0 + $0x20] sm:$0xff]
    %v35 = vld [vmem:[%s0 + $0x28] sm:$0xff]
    %v36 = vld [vmem:[%s0 + $0x30] sm:$0xff]
    %v37 = vld [vmem:[%s0 + $0x38] sm:$0xff]
    %v38 = vld [vmem:[%s0 + $0x40] sm:$0xff]
    %v39 = vld [vmem:[%s0 + $0x48] sm:$0xff]
    %v40 = vld [vmem:[%s0 + $0x50] sm:$0xff]
    %v41 = vld [vmem:[%s0 + $0x58] sm:$0xff]
    %v42 = vld [vmem:[%s0 + $0x60] sm:$0xff]
    %v43 = vld [vmem:[%s0 + $0x68] sm:$0xff]
    %v44 = vld [vmem:[%s0 + $0x70] sm:$0xff]
    %v45 = vld [vmem:[%s0 + $0x78] sm:$0xff]
    %v46 = vlaneseq
    %v47 = vand.u32 %v46, 127
    %48 = vset.pattern.permute.xlu0 0
    %49 = vperm.xlu0 %48, %v30
    %v50 = vpop.permute.xlu0 %49
    %51 = vset.pattern.permute.xlu0 0
    %52 = vperm.xlu0 %51, %v31
    %v53 = vpop.permute.xlu0 %52
    %54 = vset.pattern.permute.xlu0 0
    %55 = vperm.xlu0 %54, %v32
    %v56 = vpop.permute.xlu0 %55
    %57 = vset.pattern.permute.xlu0 0
    %58 = vperm.xlu0 %57, %v33
    %v59 = vpop.permute.xlu0 %58
    %60 = vset.pattern.permute.xlu0 0
    %61 = vperm.xlu0 %60, %v34
    %v62 = vpop.permute.xlu0 %61
    %63 = vset.pattern.permute.xlu0 0
    %64 = vperm.xlu0 %63, %v35
    %v65 = vpop.permute.xlu0 %64
    %66 = vset.pattern.permute.xlu0 0
    %67 = vperm.xlu0 %66, %v36
    %v68 = vpop.permute.xlu0 %67
    %69 = vset.pattern.permute.xlu0 0
    %70 = vperm.xlu0 %69, %v37
    %v71 = vpop.permute.xlu0 %70
    %72 = vset.pattern.permute.xlu0 0
    %73 = vperm.xlu0 %72, %v38
    %v74 = vpop.permute.xlu0 %73
    %75 = vset.pattern.permute.xlu0 0
    %76 = vperm.xlu0 %75, %v39
    %v77 = vpop.permute.xlu0 %76
    %78 = vset.pattern.permute.xlu0 0
    %79 = vperm.xlu0 %78, %v40
    %v80 = vpop.permute.xlu0 %79
    %81 = vset.pattern.permute.xlu0 0
    %82 = vperm.xlu0 %81, %v41
    %v83 = vpop.permute.xlu0 %82
    %84 = vset.pattern.permute.xlu0 0
    %85 = vperm.xlu0 %84, %v42
    %v86 = vpop.permute.xlu0 %85
    %87 = vset.pattern.permute.xlu0 0
    %88 = vperm.xlu0 %87, %v43
    %v89 = vpop.permute.xlu0 %88
    %90 = vset.pattern.permute.xlu0 0
    %91 = vperm.xlu0 %90, %v44
    %v92 = vpop.permute.xlu0 %91
    %93 = vset.pattern.permute.xlu0 0
    %94 = vperm.xlu0 %93, %v45
    %v95 = vpop.permute.xlu0 %94
    %vm96 = vcmp.eq.s32.totalorder %v50, %v47
    %vm97 = vcmp.eq.s32.totalorder %v53, %v47
    %vm98 = vcmp.eq.s32.totalorder %v56, %v47
    %vm99 = vcmp.eq.s32.totalorder %v59, %v47
    %vm100 = vcmp.eq.s32.totalorder %v62, %v47
    %vm101 = vcmp.eq.s32.totalorder %v65, %v47
    %vm102 = vcmp.eq.s32.totalorder %v68, %v47
    %vm103 = vcmp.eq.s32.totalorder %v71, %v47
    %vm104 = vcmp.eq.s32.totalorder %v74, %v47
    %vm105 = vcmp.eq.s32.totalorder %v77, %v47
    %vm106 = vcmp.eq.s32.totalorder %v80, %v47
    %vm107 = vcmp.eq.s32.totalorder %v83, %v47
    %vm108 = vcmp.eq.s32.totalorder %v86, %v47
    %vm109 = vcmp.eq.s32.totalorder %v89, %v47
    %vm110 = vcmp.eq.s32.totalorder %v92, %v47
    %vm111 = vcmp.eq.s32.totalorder %v95, %v47
    %v112 = vsel %vm96, 1, 0
    %v113 = vsel %vm97, 1, 0
    %v114 = vsel %vm98, 1, 0
    %v115 = vsel %vm99, 1, 0
    %v116 = vsel %vm100, 1, 0
    %v117 = vsel %vm101, 1, 0
    %v118 = vsel %vm102, 1, 0
    %v119 = vsel %vm103, 1, 0
    %v120 = vsel %vm104, 1, 0
    %v121 = vsel %vm105, 1, 0
    %v122 = vsel %vm106, 1, 0
    %v123 = vsel %vm107, 1, 0
    %v124 = vsel %vm108, 1, 0
    %v125 = vsel %vm109, 1, 0
    %v126 = vsel %vm110, 1, 0
    %v127 = vsel %vm111, 1, 0
    %v128 = vcvt.s32.f32 %v112
    %v129 = vcvt.s32.f32 %v113
    %v130 = vcvt.s32.f32 %v114
    %v131 = vcvt.s32.f32 %v115
    %v132 = vcvt.s32.f32 %v116
    %v133 = vcvt.s32.f32 %v117
    %v134 = vcvt.s32.f32 %v118
    %v135 = vcvt.s32.f32 %v119
    %v136 = vcvt.s32.f32 %v120
    %v137 = vcvt.s32.f32 %v121
    %v138 = vcvt.s32.f32 %v122
    %v139 = vcvt.s32.f32 %v123
    %v140 = vcvt.s32.f32 %v124
    %v141 = vcvt.s32.f32 %v125
    %v142 = vcvt.s32.f32 %v126
    %v143 = vcvt.s32.f32 %v127
    %v144 = vadd.f32 %v128, 0.0
    %v145 = vadd.f32 %v129, 0.0
    %v146 = vadd.f32 %v130, 0.0
    %v147 = vadd.f32 %v131, 0.0
    %v148 = vadd.f32 %v132, 0.0
    %v149 = vadd.f32 %v133, 0.0
    %v150 = vadd.f32 %v134, 0.0
    %v151 = vadd.f32 %v135, 0.0
    %v152 = vadd.f32 %v136, 0.0
    %v153 = vadd.f32 %v137, 0.0
    %v154 = vadd.f32 %v138, 0.0
    %v155 = vadd.f32 %v139, 0.0
    %v156 = vadd.f32 %v140, 0.0
    %v157 = vadd.f32 %v141, 0.0
    %v158 = vadd.f32 %v142, 0.0
    %v159 = vadd.f32 %v143, 0.0
    %160 = vset.pattern.permute.xlu0 1
    %161 = vperm.xlu0 %160, %v30
    %v162 = vpop.permute.xlu0 %161
    %163 = vset.pattern.permute.xlu0 1
    %164 = vperm.xlu0 %163, %v31
    %v165 = vpop.permute.xlu0 %164
    %166 = vset.pattern.permute.xlu0 1
    %167 = vperm.xlu0 %166, %v32
    %v168 = vpop.permute.xlu0 %167
    %169 = vset.pattern.permute.xlu0 1
    %170 = vperm.xlu0 %169, %v33
    %v171 = vpop.permute.xlu0 %170
    %172 = vset.pattern.permute.xlu0 1
    %173 = vperm.xlu0 %172, %v34
    %v174 = vpop.permute.xlu0 %173
    %175 = vset.pattern.permute.xlu0 1
    %176 = vperm.xlu0 %175, %v35
    %v177 = vpop.permute.xlu0 %176
    %178 = vset.pattern.permute.xlu0 1
    %179 = vperm.xlu0 %178, %v36
    %v180 = vpop.permute.xlu0 %179
    %181 = vset.pattern.permute.xlu0 1
    %182 = vperm.xlu0 %181, %v37
    %v183 = vpop.permute.xlu0 %182
    %184 = vset.pattern.permute.xlu0 1
    %185 = vperm.xlu0 %184, %v38
    %v186 = vpop.permute.xlu0 %185
    %187 = vset.pattern.permute.xlu0 1
    %188 = vperm.xlu0 %187, %v39
    %v189 = vpop.permute.xlu0 %188
    %190 = vset.pattern.permute.xlu0 1
    %191 = vperm.xlu0 %190, %v40
    %v192 = vpop.permute.xlu0 %191
    %193 = vset.pattern.permute.xlu0 1
    %194 = vperm.xlu0 %193, %v41
    %v195 = vpop.permute.xlu0 %194
    %196 = vset.pattern.permute.xlu0 1
    %197 = vperm.xlu0 %196, %v42
    %v198 = vpop.permute.xlu0 %197
    %199 = vset.pattern.permute.xlu0 1
    %200 = vperm.xlu0 %199, %v43
    %v201 = vpop.permute.xlu0 %200
    %202 = vset.pattern.permute.xlu0 1
    %203 = vperm.xlu0 %202, %v44
    %v204 = vpop.permute.xlu0 %203
    %205 = vset.pattern.permute.xlu0 1
    %206 = vperm.xlu0 %205, %v45
    %v207 = vpop.permute.xlu0 %206
    %vm208 = vcmp.eq.s32.totalorder %v162, %v47
    %vm209 = vcmp.eq.s32.totalorder %v165, %v47
    %vm210 = vcmp.eq.s32.totalorder %v168, %v47
    %vm211 = vcmp.eq.s32.totalorder %v171, %v47
    %vm212 = vcmp.eq.s32.totalorder %v174, %v47
    %vm213 = vcmp.eq.s32.totalorder %v177, %v47
    %vm214 = vcmp.eq.s32.totalorder %v180, %v47
    %vm215 = vcmp.eq.s32.totalorder %v183, %v47
    %vm216 = vcmp.eq.s32.totalorder %v186, %v47
    %vm217 = vcmp.eq.s32.totalorder %v189, %v47
    %vm218 = vcmp.eq.s32.totalorder %v192, %v47
    %vm219 = vcmp.eq.s32.totalorder %v195, %v47
    %vm220 = vcmp.eq.s32.totalorder %v198, %v47
    %vm221 = vcmp.eq.s32.totalorder %v201, %v47
    %vm222 = vcmp.eq.s32.totalorder %v204, %v47
    %vm223 = vcmp.eq.s32.totalorder %v207, %v47
    %v224 = vsel %vm208, 1, 0
    %v225 = vsel %vm209, 1, 0
    %v226 = vsel %vm210, 1, 0
    %v227 = vsel %vm211, 1, 0
    %v228 = vsel %vm212, 1, 0
    %v229 = vsel %vm213, 1, 0
    %v230 = vsel %vm214, 1, 0
    %v231 = vsel %vm215, 1, 0
    %v232 = vsel %vm216, 1, 0
    %v233 = vsel %vm217, 1, 0
    %v234 = vsel %vm218, 1, 0
    %v235 = vsel %vm219, 1, 0
    %v236 = vsel %vm220, 1, 0
    %v237 = vsel %vm221, 1, 0
    %v238 = vsel %vm222, 1, 0
    %v239 = vsel %vm223, 1, 0
    %v240 = vcvt.s32.f32 %v224
    %v241 = vcvt.s32.f32 %v225
    %v242 = vcvt.s32.f32 %v226
    %v243 = vcvt.s32.f32 %v227
    %v244 = vcvt.s32.f32 %v228
    %v245 = vcvt.s32.f32 %v229
    %v246 = vcvt.s32.f32 %v230
    %v247 = vcvt.s32.f32 %v231
    %v248 = vcvt.s32.f32 %v232
    %v249 = vcvt.s32.f32 %v233
    %v250 = vcvt.s32.f32 %v234
    %v251 = vcvt.s32.f32 %v235
    %v252 = vcvt.s32.f32 %v236
    %v253 = vcvt.s32.f32 %v237
    %v254 = vcvt.s32.f32 %v238
    %v255 = vcvt.s32.f32 %v239
    %v256 = vadd.f32 %v144, %v240
    %v257 = vadd.f32 %v145, %v241
    %v258 = vadd.f32 %v146, %v242
    %v259 = vadd.f32 %v147, %v243
    %v260 = vadd.f32 %v148, %v244
    %v261 = vadd.f32 %v149, %v245
    %v262 = vadd.f32 %v150, %v246
    %v263 = vadd.f32 %v151, %v247
    %v264 = vadd.f32 %v152, %v248
    %v265 = vadd.f32 %v153, %v249
    %v266 = vadd.f32 %v154, %v250
    %v267 = vadd.f32 %v155, %v251
    %v268 = vadd.f32 %v156, %v252
    %v269 = vadd.f32 %v157, %v253
    %v270 = vadd.f32 %v158, %v254
    %v271 = vadd.f32 %v159, %v255
    %272 = vset.pattern.permute.xlu0 2
    %273 = vperm.xlu0 %272, %v30
    %v274 = vpop.permute.xlu0 %273
    %275 = vset.pattern.permute.xlu0 2
    %276 = vperm.xlu0 %275, %v31
    %v277 = vpop.permute.xlu0 %276
    %278 = vset.pattern.permute.xlu0 2
    %279 = vperm.xlu0 %278, %v32
    %v280 = vpop.permute.xlu0 %279
    %281 = vset.pattern.permute.xlu0 2
    %282 = vperm.xlu0 %281, %v33
    %v283 = vpop.permute.xlu0 %282
    %284 = vset.pattern.permute.xlu0 2
    %285 = vperm.xlu0 %284, %v34
    %v286 = vpop.permute.xlu0 %285
    %287 = vset.pattern.permute.xlu0 2
    %288 = vperm.xlu0 %287, %v35
    %v289 = vpop.permute.xlu0 %288
    %290 = vset.pattern.permute.xlu0 2
    %291 = vperm.xlu0 %290, %v36
    %v292 = vpop.permute.xlu0 %291
    %293 = vset.pattern.permute.xlu0 2
    %294 = vperm.xlu0 %293, %v37
    %v295 = vpop.permute.xlu0 %294
    %296 = vset.pattern.permute.xlu0 2
    %297 = vperm.xlu0 %296, %v38
    %v298 = vpop.permute.xlu0 %297
    %299 = vset.pattern.permute.xlu0 2
    %300 = vperm.xlu0 %299, %v39
    %v301 = vpop.permute.xlu0 %300
    %302 = vset.pattern.permute.xlu0 2
    %303 = vperm.xlu0 %302, %v40
    %v304 = vpop.permute.xlu0 %303
    %305 = vset.pattern.permute.xlu0 2
    %306 = vperm.xlu0 %305, %v41
    %v307 = vpop.permute.xlu0 %306
    %308 = vset.pattern.permute.xlu0 2
    %309 = vperm.xlu0 %308, %v42
    %v310 = vpop.permute.xlu0 %309
    %311 = vset.pattern.permute.xlu0 2
    %312 = vperm.xlu0 %311, %v43
    %v313 = vpop.permute.xlu0 %312
    %314 = vset.pattern.permute.xlu0 2
    %315 = vperm.xlu0 %314, %v44
    %v316 = vpop.permute.xlu0 %315
    %317 = vset.pattern.permute.xlu0 2
    %318 = vperm.xlu0 %317, %v45
    %v319 = vpop.permute.xlu0 %318
    %vm320 = vcmp.eq.s32.totalorder %v274, %v47
    %vm321 = vcmp.eq.s32.totalorder %v277, %v47
    %vm322 = vcmp.eq.s32.totalorder %v280, %v47
    %vm323 = vcmp.eq.s32.totalorder %v283, %v47
    %vm324 = vcmp.eq.s32.totalorder %v286, %v47
    %vm325 = vcmp.eq.s32.totalorder %v289, %v47
    %vm326 = vcmp.eq.s32.totalorder %v292, %v47
    %vm327 = vcmp.eq.s32.totalorder %v295, %v47
    %vm328 = vcmp.eq.s32.totalorder %v298, %v47
    %vm329 = vcmp.eq.s32.totalorder %v301, %v47
    %vm330 = vcmp.eq.s32.totalorder %v304, %v47
    %vm331 = vcmp.eq.s32.totalorder %v307, %v47
    %vm332 = vcmp.eq.s32.totalorder %v310, %v47
    %vm333 = vcmp.eq.s32.totalorder %v313, %v47
    %vm334 = vcmp.eq.s32.totalorder %v316, %v47
    %vm335 = vcmp.eq.s32.totalorder %v319, %v47
    %v336 = vsel %vm320, 1, 0
    %v337 = vsel %vm321, 1, 0
    %v338 = vsel %vm322, 1, 0
    %v339 = vsel %vm323, 1, 0
    %v340 = vsel %vm324, 1, 0
    %v341 = vsel %vm325, 1, 0
    %v342 = vsel %vm326, 1, 0
    %v343 = vsel %vm327, 1, 0
    %v344 = vsel %vm328, 1, 0
    %v345 = vsel %vm329, 1, 0
    %v346 = vsel %vm330, 1, 0
    %v347 = vsel %vm331, 1, 0
    %v348 = vsel %vm332, 1, 0
    %v349 = vsel %vm333, 1, 0
    %v350 = vsel %vm334, 1, 0
    %v351 = vsel %vm335, 1, 0
    %v352 = vcvt.s32.f32 %v336
    %v353 = vcvt.s32.f32 %v337
    %v354 = vcvt.s32.f32 %v338
    %v355 = vcvt.s32.f32 %v339
    %v356 = vcvt.s32.f32 %v340
    %v357 = vcvt.s32.f32 %v341
    %v358 = vcvt.s32.f32 %v342
    %v359 = vcvt.s32.f32 %v343
    %v360 = vcvt.s32.f32 %v344
    %v361 = vcvt.s32.f32 %v345
    %v362 = vcvt.s32.f32 %v346
    %v363 = vcvt.s32.f32 %v347
    %v364 = vcvt.s32.f32 %v348
    %v365 = vcvt.s32.f32 %v349
    %v366 = vcvt.s32.f32 %v350
    %v367 = vcvt.s32.f32 %v351
    %v368 = vadd.f32 %v256, %v352
    %v369 = vadd.f32 %v257, %v353
    %v370 = vadd.f32 %v258, %v354
    %v371 = vadd.f32 %v259, %v355
    %v372 = vadd.f32 %v260, %v356
    %v373 = vadd.f32 %v261, %v357
    %v374 = vadd.f32 %v262, %v358
    %v375 = vadd.f32 %v263, %v359
    %v376 = vadd.f32 %v264, %v360
    %v377 = vadd.f32 %v265, %v361
    %v378 = vadd.f32 %v266, %v362
    %v379 = vadd.f32 %v267, %v363
    %v380 = vadd.f32 %v268, %v364
    %v381 = vadd.f32 %v269, %v365
    %v382 = vadd.f32 %v270, %v366
    %v383 = vadd.f32 %v271, %v367
    %v384 = vld [vmem:[%s5] sm:$0xff]
    %v385 = vld [vmem:[%s5 + $0x8] sm:$0xff]
    %v386 = vld [vmem:[%s5 + $0x10] sm:$0xff]
    %v387 = vld [vmem:[%s5 + $0x18] sm:$0xff]
    %v388 = vld [vmem:[%s5 + $0x20] sm:$0xff]
    %v389 = vld [vmem:[%s5 + $0x28] sm:$0xff]
    %v390 = vld [vmem:[%s5 + $0x30] sm:$0xff]
    %v391 = vld [vmem:[%s5 + $0x38] sm:$0xff]
    %v392 = vld [vmem:[%s5 + $0x40] sm:$0xff]
    %v393 = vld [vmem:[%s5 + $0x48] sm:$0xff]
    %v394 = vld [vmem:[%s5 + $0x50] sm:$0xff]
    %v395 = vld [vmem:[%s5 + $0x58] sm:$0xff]
    %v396 = vld [vmem:[%s5 + $0x60] sm:$0xff]
    %v397 = vld [vmem:[%s5 + $0x68] sm:$0xff]
    %v398 = vld [vmem:[%s5 + $0x70] sm:$0xff]
    %v399 = vld [vmem:[%s5 + $0x78] sm:$0xff]
    %v400 = vld [vmem:[%s1] sm:$0xff]
    %v401 = vld [vmem:[%s1 + $0x8] sm:$0xff]
    %v402 = vld [vmem:[%s1 + $0x10] sm:$0xff]
    %v403 = vld [vmem:[%s1 + $0x18] sm:$0xff]
    %v404 = vld [vmem:[%s1 + $0x20] sm:$0xff]
    %v405 = vld [vmem:[%s1 + $0x28] sm:$0xff]
    %v406 = vld [vmem:[%s1 + $0x30] sm:$0xff]
    %v407 = vld [vmem:[%s1 + $0x38] sm:$0xff]
    %v408 = vld [vmem:[%s1 + $0x40] sm:$0xff]
    %v409 = vld [vmem:[%s1 + $0x48] sm:$0xff]
    %v410 = vld [vmem:[%s1 + $0x50] sm:$0xff]
    %v411 = vld [vmem:[%s1 + $0x58] sm:$0xff]
    %v412 = vld [vmem:[%s1 + $0x60] sm:$0xff]
    %v413 = vld [vmem:[%s1 + $0x68] sm:$0xff]
    %v414 = vld [vmem:[%s1 + $0x70] sm:$0xff]
    %v415 = vld [vmem:[%s1 + $0x78] sm:$0xff]
    %v416 = vld [vmem:[%s6] sm:$0xff]
    %v417 = vld [vmem:[%s6 + $0x8] sm:$0xff]
    %v418 = vld [vmem:[%s7] sm:$0x3]
    %v419 = vld [vmem:[%s2] sm:$0xff]
    %v420 = vld [vmem:[%s2 + $0x8] sm:$0xff]
    %v421 = vld [vmem:[%s2 + $0x10] sm:$0xff]
    %v422 = vld [vmem:[%s2 + $0x18] sm:$0xff]
    %v423 = vld [vmem:[%s2 + $0x20] sm:$0xff]
    %v424 = vld [vmem:[%s2 + $0x28] sm:$0xff]
    %v425 = vld [vmem:[%s2 + $0x30] sm:$0xff]
    %v426 = vld [vmem:[%s2 + $0x38] sm:$0xff]
    %v427 = vld [vmem:[%s2 + $0x40] sm:$0xff]
    %v428 = vld [vmem:[%s2 + $0x48] sm:$0xff]
    %v429 = vld [vmem:[%s2 + $0x50] sm:$0xff]
    %v430 = vld [vmem:[%s2 + $0x58] sm:$0xff]
    %v431 = vld [vmem:[%s2 + $0x60] sm:$0xff]
    %v432 = vld [vmem:[%s2 + $0x68] sm:$0xff]
    %v433 = vld [vmem:[%s2 + $0x70] sm:$0xff]
    %v434 = vld [vmem:[%s2 + $0x78] sm:$0xff]
    %vm435 = vcmp.eq.s32.totalorder %v419, 1
    %vm436 = vcmp.eq.s32.totalorder %v420, 1
    %vm437 = vcmp.eq.s32.totalorder %v421, 1
    %vm438 = vcmp.eq.s32.totalorder %v422, 1
    %vm439 = vcmp.eq.s32.totalorder %v423, 1
    %vm440 = vcmp.eq.s32.totalorder %v424, 1
    %vm441 = vcmp.eq.s32.totalorder %v425, 1
    %vm442 = vcmp.eq.s32.totalorder %v426, 1
    %vm443 = vcmp.eq.s32.totalorder %v427, 1
    %vm444 = vcmp.eq.s32.totalorder %v428, 1
    %vm445 = vcmp.eq.s32.totalorder %v429, 1
    %vm446 = vcmp.eq.s32.totalorder %v430, 1
    %vm447 = vcmp.eq.s32.totalorder %v431, 1
    %vm448 = vcmp.eq.s32.totalorder %v432, 1
    %vm449 = vcmp.eq.s32.totalorder %v433, 1
    %vm450 = vcmp.eq.s32.totalorder %v434, 1
    %v451 = vsel %vm435, 1, 0
    %v452 = vsel %vm436, 1, 0
    %v453 = vsel %vm437, 1, 0
    %v454 = vsel %vm438, 1, 0
    %v455 = vsel %vm439, 1, 0
    %v456 = vsel %vm440, 1, 0
    %v457 = vsel %vm441, 1, 0
    %v458 = vsel %vm442, 1, 0
    %v459 = vsel %vm443, 1, 0
    %v460 = vsel %vm444, 1, 0
    %v461 = vsel %vm445, 1, 0
    %v462 = vsel %vm446, 1, 0
    %v463 = vsel %vm447, 1, 0
    %v464 = vsel %vm448, 1, 0
    %v465 = vsel %vm449, 1, 0
    %v466 = vsel %vm450, 1, 0
    %v467 = vcvt.s32.f32 %v451
    %v468 = vcvt.s32.f32 %v452
    %v469 = vcvt.s32.f32 %v453
    %v470 = vcvt.s32.f32 %v454
    %v471 = vcvt.s32.f32 %v455
    %v472 = vcvt.s32.f32 %v456
    %v473 = vcvt.s32.f32 %v457
    %v474 = vcvt.s32.f32 %v458
    %v475 = vcvt.s32.f32 %v459
    %v476 = vcvt.s32.f32 %v460
    %v477 = vcvt.s32.f32 %v461
    %v478 = vcvt.s32.f32 %v462
    %v479 = vcvt.s32.f32 %v463
    %v480 = vcvt.s32.f32 %v464
    %v481 = vcvt.s32.f32 %v465
    %v482 = vcvt.s32.f32 %v466
    %484 = vset.pattern.permute.xlu0 0
    %485 = vperm.xlu0 %484, %v467
    %v486 = vpop.permute.xlu0 %485
    %489 = vset.pattern.permute.xlu0 0
    %490 = vperm.xlu0 %489, %v468
    %v491 = vpop.permute.xlu0 %490
    %494 = vset.pattern.permute.xlu0 0
    %495 = vperm.xlu0 %494, %v469
    %v496 = vpop.permute.xlu0 %495
    %499 = vset.pattern.permute.xlu0 0
    %500 = vperm.xlu0 %499, %v470
    %v501 = vpop.permute.xlu0 %500
    %504 = vset.pattern.permute.xlu0 0
    %505 = vperm.xlu0 %504, %v471
    %v506 = vpop.permute.xlu0 %505
    %509 = vset.pattern.permute.xlu0 0
    %510 = vperm.xlu0 %509, %v472
    %v511 = vpop.permute.xlu0 %510
    %514 = vset.pattern.permute.xlu0 0
    %515 = vperm.xlu0 %514, %v473
    %v516 = vpop.permute.xlu0 %515
    %519 = vset.pattern.permute.xlu0 0
    %520 = vperm.xlu0 %519, %v474
    %v521 = vpop.permute.xlu0 %520
    %524 = vset.pattern.permute.xlu0 0
    %525 = vperm.xlu0 %524, %v475
    %v526 = vpop.permute.xlu0 %525
    %529 = vset.pattern.permute.xlu0 0
    %530 = vperm.xlu0 %529, %v476
    %v531 = vpop.permute.xlu0 %530
    %534 = vset.pattern.permute.xlu0 0
    %535 = vperm.xlu0 %534, %v477
    %v536 = vpop.permute.xlu0 %535
    %539 = vset.pattern.permute.xlu0 0
    %540 = vperm.xlu0 %539, %v478
    %v541 = vpop.permute.xlu0 %540
    %544 = vset.pattern.permute.xlu0 0
    %545 = vperm.xlu0 %544, %v479
    %v546 = vpop.permute.xlu0 %545
    %549 = vset.pattern.permute.xlu0 0
    %550 = vperm.xlu0 %549, %v480
    %v551 = vpop.permute.xlu0 %550
    %554 = vset.pattern.permute.xlu0 0
    %555 = vperm.xlu0 %554, %v481
    %v556 = vpop.permute.xlu0 %555
    %559 = vset.pattern.permute.xlu0 0
    %560 = vperm.xlu0 %559, %v482
    %v561 = vpop.permute.xlu0 %560
    %v563 = vperm.slane %v418, 1
    %v564 = vmul.f32 %v486, %v563
    %v565 = vmul.f32 %v491, %v563
    %v566 = vmul.f32 %v496, %v563
    %v567 = vmul.f32 %v501, %v563
    %v568 = vmul.f32 %v506, %v563
    %v569 = vmul.f32 %v511, %v563
    %v570 = vmul.f32 %v516, %v563
    %v571 = vmul.f32 %v521, %v563
    %v572 = vmul.f32 %v526, %v563
    %v573 = vmul.f32 %v531, %v563
    %v574 = vmul.f32 %v536, %v563
    %v575 = vmul.f32 %v541, %v563
    %v576 = vmul.f32 %v546, %v563
    %v577 = vmul.f32 %v551, %v563
    %v578 = vmul.f32 %v556, %v563
    %v579 = vmul.f32 %v561, %v563
    %v580 = vsub.f32 1.0, %v467
    %v581 = vsub.f32 1.0, %v468
    %v582 = vsub.f32 1.0, %v469
    %v583 = vsub.f32 1.0, %v470
    %v584 = vsub.f32 1.0, %v471
    %v585 = vsub.f32 1.0, %v472
    %v586 = vsub.f32 1.0, %v473
    %v587 = vsub.f32 1.0, %v474
    %v588 = vsub.f32 1.0, %v475
    %v589 = vsub.f32 1.0, %v476
    %v590 = vsub.f32 1.0, %v477
    %v591 = vsub.f32 1.0, %v478
    %v592 = vsub.f32 1.0, %v479
    %v593 = vsub.f32 1.0, %v480
    %v594 = vsub.f32 1.0, %v481
    %v595 = vsub.f32 1.0, %v482
    %597 = vset.pattern.permute.xlu0 0
    %598 = vperm.xlu0 %597, %v580
    %v599 = vpop.permute.xlu0 %598
    %602 = vset.pattern.permute.xlu0 0
    %603 = vperm.xlu0 %602, %v581
    %v604 = vpop.permute.xlu0 %603
    %607 = vset.pattern.permute.xlu0 0
    %608 = vperm.xlu0 %607, %v582
    %v609 = vpop.permute.xlu0 %608
    %612 = vset.pattern.permute.xlu0 0
    %613 = vperm.xlu0 %612, %v583
    %v614 = vpop.permute.xlu0 %613
    %617 = vset.pattern.permute.xlu0 0
    %618 = vperm.xlu0 %617, %v584
    %v619 = vpop.permute.xlu0 %618
    %622 = vset.pattern.permute.xlu0 0
    %623 = vperm.xlu0 %622, %v585
    %v624 = vpop.permute.xlu0 %623
    %627 = vset.pattern.permute.xlu0 0
    %628 = vperm.xlu0 %627, %v586
    %v629 = vpop.permute.xlu0 %628
    %632 = vset.pattern.permute.xlu0 0
    %633 = vperm.xlu0 %632, %v587
    %v634 = vpop.permute.xlu0 %633
    %637 = vset.pattern.permute.xlu0 0
    %638 = vperm.xlu0 %637, %v588
    %v639 = vpop.permute.xlu0 %638
    %642 = vset.pattern.permute.xlu0 0
    %643 = vperm.xlu0 %642, %v589
    %v644 = vpop.permute.xlu0 %643
    %647 = vset.pattern.permute.xlu0 0
    %648 = vperm.xlu0 %647, %v590
    %v649 = vpop.permute.xlu0 %648
    %652 = vset.pattern.permute.xlu0 0
    %653 = vperm.xlu0 %652, %v591
    %v654 = vpop.permute.xlu0 %653
    %657 = vset.pattern.permute.xlu0 0
    %658 = vperm.xlu0 %657, %v592
    %v659 = vpop.permute.xlu0 %658
    %662 = vset.pattern.permute.xlu0 0
    %663 = vperm.xlu0 %662, %v593
    %v664 = vpop.permute.xlu0 %663
    %667 = vset.pattern.permute.xlu0 0
    %668 = vperm.xlu0 %667, %v594
    %v669 = vpop.permute.xlu0 %668
    %672 = vset.pattern.permute.xlu0 0
    %673 = vperm.xlu0 %672, %v595
    %v674 = vpop.permute.xlu0 %673
    %v676 = vperm.slane %v418, 0
    %v677 = vmul.f32 %v599, %v676
    %v678 = vmul.f32 %v604, %v676
    %v679 = vmul.f32 %v609, %v676
    %v680 = vmul.f32 %v614, %v676
    %v681 = vmul.f32 %v619, %v676
    %v682 = vmul.f32 %v624, %v676
    %v683 = vmul.f32 %v629, %v676
    %v684 = vmul.f32 %v634, %v676
    %v685 = vmul.f32 %v639, %v676
    %v686 = vmul.f32 %v644, %v676
    %v687 = vmul.f32 %v649, %v676
    %v688 = vmul.f32 %v654, %v676
    %v689 = vmul.f32 %v659, %v676
    %v690 = vmul.f32 %v664, %v676
    %v691 = vmul.f32 %v669, %v676
    %v692 = vmul.f32 %v674, %v676
    %v693 = vadd.f32 %v564, %v677
    %v694 = vadd.f32 %v565, %v678
    %v695 = vadd.f32 %v566, %v679
    %v696 = vadd.f32 %v567, %v680
    %v697 = vadd.f32 %v568, %v681
    %v698 = vadd.f32 %v569, %v682
    %v699 = vadd.f32 %v570, %v683
    %v700 = vadd.f32 %v571, %v684
    %v701 = vadd.f32 %v572, %v685
    %v702 = vadd.f32 %v573, %v686
    %v703 = vadd.f32 %v574, %v687
    %v704 = vadd.f32 %v575, %v688
    %v705 = vadd.f32 %v576, %v689
    %v706 = vadd.f32 %v577, %v690
    %v707 = vadd.f32 %v578, %v691
    %v708 = vadd.f32 %v579, %v692
    %v709 = vld [vmem:[%s4] sm:$0xff]
    %v710 = vld [vmem:[%s4 + $0x8] sm:$0xff]
    %v711 = vld [vmem:[%s4 + $0x10] sm:$0xff]
    %v712 = vld [vmem:[%s4 + $0x18] sm:$0xff]
    %v713 = vld [vmem:[%s4 + $0x20] sm:$0xff]
    %v714 = vld [vmem:[%s4 + $0x28] sm:$0xff]
    %v715 = vld [vmem:[%s4 + $0x30] sm:$0xff]
    %v716 = vld [vmem:[%s4 + $0x38] sm:$0xff]
    %v717 = vld [vmem:[%s4 + $0x40] sm:$0xff]
    %v718 = vld [vmem:[%s4 + $0x48] sm:$0xff]
    %v719 = vld [vmem:[%s4 + $0x50] sm:$0xff]
    %v720 = vld [vmem:[%s4 + $0x58] sm:$0xff]
    %v721 = vld [vmem:[%s4 + $0x60] sm:$0xff]
    %v722 = vld [vmem:[%s4 + $0x68] sm:$0xff]
    %v723 = vld [vmem:[%s4 + $0x70] sm:$0xff]
    %v724 = vld [vmem:[%s4 + $0x78] sm:$0xff]
    %vm725 = vcmask 130048
    %v727 = vsel %vm725, %v400, 0
    %v730 = vsel %vm725, %v401, 0
    %v733 = vsel %vm725, %v402, 0
    %v736 = vsel %vm725, %v403, 0
    %v739 = vsel %vm725, %v404, 0
    %v742 = vsel %vm725, %v405, 0
    %v745 = vsel %vm725, %v406, 0
    %v748 = vsel %vm725, %v407, 0
    %v751 = vsel %vm725, %v408, 0
    %v754 = vsel %vm725, %v409, 0
    %v757 = vsel %vm725, %v410, 0
    %v760 = vsel %vm725, %v411, 0
    %v763 = vsel %vm725, %v412, 0
    %v766 = vsel %vm725, %v413, 0
    %v769 = vsel %vm725, %v414, 0
    %v772 = vsel %vm725, %v415, 0
    %774 = vmatpush.msra.mxu0 0.0
    %775 = vmatpush.msra.mxu0 0.0
    %776 = vmatpush.msra.mxu0 0.0
    %777 = vmatpush.msra.mxu0 0.0
    %778 = vmatpush.msra.mxu0 0.0
    %779 = vmatpush.msra.mxu0 0.0
    %780 = vmatpush.msra.mxu0 0.0
    %781 = vmatpush.msra.mxu0 0.0
    %782 = vmatpush.msra.mxu0 0.0
    %783 = vmatpush.msra.mxu0 0.0
    %784 = vmatpush.msra.mxu0 0.0
    %785 = vmatpush.msra.mxu0 0.0
    %786 = vmatpush.msra.mxu0 0.0
    %787 = vmatpush.msra.mxu0 0.0
    %v788 = vand.u32 %v417, 4294901760
    %789 = vmatpush.msra.mxu0 %v788
    %v790 = vand.u32 %v416, 4294901760
    %791 = vmatpush.msra.mxu0 %v790
    %v792 = vand.u32 %v727, 4294901760
    %v793 = vsub.f32 %v727, %v792
    %v794 = vand.u32 %v793, 4294901760
    %v795 = vsub.f32 %v793, %v794
    %v796 = vand.u32 %v795, 4294901760
    %797 = vmatmul.f32.gmra.mxu0 %v796
    %v798 = vpop.f32.mrf.mxu0
    %v799 = vadd.f32 %v693, %v798
    %v800 = vand.u32 %v730, 4294901760
    %v801 = vsub.f32 %v730, %v800
    %v802 = vand.u32 %v801, 4294901760
    %v803 = vsub.f32 %v801, %v802
    %v804 = vand.u32 %v803, 4294901760
    %805 = vmatmul.f32.gmra.mxu0 %v804
    %v806 = vpop.f32.mrf.mxu0
    %v807 = vadd.f32 %v694, %v806
    %v808 = vand.u32 %v733, 4294901760
    %v809 = vsub.f32 %v733, %v808
    %v810 = vand.u32 %v809, 4294901760
    %v811 = vsub.f32 %v809, %v810
    %v812 = vand.u32 %v811, 4294901760
    %813 = vmatmul.f32.gmra.mxu0 %v812
    %v814 = vpop.f32.mrf.mxu0
    %v815 = vadd.f32 %v695, %v814
    %v816 = vand.u32 %v736, 4294901760
    %v817 = vsub.f32 %v736, %v816
    %v818 = vand.u32 %v817, 4294901760
    %v819 = vsub.f32 %v817, %v818
    %v820 = vand.u32 %v819, 4294901760
    %821 = vmatmul.f32.gmra.mxu0 %v820
    %v822 = vpop.f32.mrf.mxu0
    %v823 = vadd.f32 %v696, %v822
    %v824 = vand.u32 %v739, 4294901760
    %v825 = vsub.f32 %v739, %v824
    %v826 = vand.u32 %v825, 4294901760
    %v827 = vsub.f32 %v825, %v826
    %v828 = vand.u32 %v827, 4294901760
    %829 = vmatmul.f32.gmra.mxu0 %v828
    %v830 = vpop.f32.mrf.mxu0
    %v831 = vadd.f32 %v697, %v830
    %v832 = vand.u32 %v742, 4294901760
    %v833 = vsub.f32 %v742, %v832
    %v834 = vand.u32 %v833, 4294901760
    %v835 = vsub.f32 %v833, %v834
    %v836 = vand.u32 %v835, 4294901760
    %837 = vmatmul.f32.gmra.mxu0 %v836
    %v838 = vpop.f32.mrf.mxu0
    %v839 = vadd.f32 %v698, %v838
    %v840 = vand.u32 %v745, 4294901760
    %v841 = vsub.f32 %v745, %v840
    %v842 = vand.u32 %v841, 4294901760
    %v843 = vsub.f32 %v841, %v842
    %v844 = vand.u32 %v843, 4294901760
    %845 = vmatmul.f32.gmra.mxu0 %v844
    %v846 = vpop.f32.mrf.mxu0
    %v847 = vadd.f32 %v699, %v846
    %v848 = vand.u32 %v748, 4294901760
    %v849 = vsub.f32 %v748, %v848
    %v850 = vand.u32 %v849, 4294901760
    %v851 = vsub.f32 %v849, %v850
    %v852 = vand.u32 %v851, 4294901760
    %853 = vmatmul.f32.gmra.mxu0 %v852
    %v854 = vpop.f32.mrf.mxu0
    %v855 = vadd.f32 %v700, %v854
    %v856 = vand.u32 %v751, 4294901760
    %v857 = vsub.f32 %v751, %v856
    %v858 = vand.u32 %v857, 4294901760
    %v859 = vsub.f32 %v857, %v858
    %v860 = vand.u32 %v859, 4294901760
    %861 = vmatmul.f32.gmra.mxu0 %v860
    %v862 = vpop.f32.mrf.mxu0
    %v863 = vadd.f32 %v701, %v862
    %v864 = vand.u32 %v754, 4294901760
    %v865 = vsub.f32 %v754, %v864
    %v866 = vand.u32 %v865, 4294901760
    %v867 = vsub.f32 %v865, %v866
    %v868 = vand.u32 %v867, 4294901760
    %869 = vmatmul.f32.gmra.mxu0 %v868
    %v870 = vpop.f32.mrf.mxu0
    %v871 = vadd.f32 %v702, %v870
    %v872 = vand.u32 %v757, 4294901760
    %v873 = vsub.f32 %v757, %v872
    %v874 = vand.u32 %v873, 4294901760
    %v875 = vsub.f32 %v873, %v874
    %v876 = vand.u32 %v875, 4294901760
    %877 = vmatmul.f32.gmra.mxu0 %v876
    %v878 = vpop.f32.mrf.mxu0
    %v879 = vadd.f32 %v703, %v878
    %v880 = vand.u32 %v760, 4294901760
    %v881 = vsub.f32 %v760, %v880
    %v882 = vand.u32 %v881, 4294901760
    %v883 = vsub.f32 %v881, %v882
    %v884 = vand.u32 %v883, 4294901760
    %885 = vmatmul.f32.gmra.mxu0 %v884
    %v886 = vpop.f32.mrf.mxu0
    %v887 = vadd.f32 %v704, %v886
    %v888 = vand.u32 %v763, 4294901760
    %v889 = vsub.f32 %v763, %v888
    %v890 = vand.u32 %v889, 4294901760
    %v891 = vsub.f32 %v889, %v890
    %v892 = vand.u32 %v891, 4294901760
    %893 = vmatmul.f32.gmra.mxu0 %v892
    %v894 = vpop.f32.mrf.mxu0
    %v895 = vadd.f32 %v705, %v894
    %v896 = vand.u32 %v766, 4294901760
    %v897 = vsub.f32 %v766, %v896
    %v898 = vand.u32 %v897, 4294901760
    %v899 = vsub.f32 %v897, %v898
    %v900 = vand.u32 %v899, 4294901760
    %901 = vmatmul.f32.gmra.mxu0 %v900
    %v902 = vpop.f32.mrf.mxu0
    %v903 = vadd.f32 %v706, %v902
    %v904 = vand.u32 %v769, 4294901760
    %v905 = vsub.f32 %v769, %v904
    %v906 = vand.u32 %v905, 4294901760
    %v907 = vsub.f32 %v905, %v906
    %v908 = vand.u32 %v907, 4294901760
    %909 = vmatmul.f32.gmra.mxu0 %v908
    %v910 = vpop.f32.mrf.mxu0
    %v911 = vadd.f32 %v707, %v910
    %v912 = vand.u32 %v772, 4294901760
    %v913 = vsub.f32 %v772, %v912
    %v914 = vand.u32 %v913, 4294901760
    %v915 = vsub.f32 %v913, %v914
    %v916 = vand.u32 %v915, 4294901760
    %917 = vmatmul.f32.gmra.mxu0 %v916
    %v918 = vpop.f32.mrf.mxu0
    %v919 = vadd.f32 %v708, %v918
    %920 = vdwg.mxu0
    %921 = vmatpush.msra.mxu0 0.0
    %922 = vmatpush.msra.mxu0 0.0
    %923 = vmatpush.msra.mxu0 0.0
    %924 = vmatpush.msra.mxu0 0.0
    %925 = vmatpush.msra.mxu0 0.0
    %926 = vmatpush.msra.mxu0 0.0
    %927 = vmatpush.msra.mxu0 0.0
    %928 = vmatpush.msra.mxu0 0.0
    %929 = vmatpush.msra.mxu0 0.0
    %930 = vmatpush.msra.mxu0 0.0
    %931 = vmatpush.msra.mxu0 0.0
    %932 = vmatpush.msra.mxu0 0.0
    %933 = vmatpush.msra.mxu0 0.0
    %934 = vmatpush.msra.mxu0 0.0
    %v935 = vand.u32 %v417, 4294901760
    %v936 = vsub.f32 %v417, %v935
    %v937 = vand.u32 %v936, 4294901760
    %v938 = vsub.f32 %v936, %v937
    %v939 = vand.u32 %v938, 4294901760
    %940 = vmatpush.msra.mxu0 %v939
    %v941 = vand.u32 %v416, 4294901760
    %v942 = vsub.f32 %v416, %v941
    %v943 = vand.u32 %v942, 4294901760
    %v944 = vsub.f32 %v942, %v943
    %v945 = vand.u32 %v944, 4294901760
    %946 = vmatpush.msra.mxu0 %v945
    %v947 = vand.u32 %v727, 4294901760
    %948 = vmatmul.f32.gmra.mxu0 %v947
    %v949 = vpop.f32.mrf.mxu0
    %v950 = vadd.f32 %v799, %v949
    %v951 = vand.u32 %v730, 4294901760
    %952 = vmatmul.f32.gmra.mxu0 %v951
    %v953 = vpop.f32.mrf.mxu0
    %v954 = vadd.f32 %v807, %v953
    %v955 = vand.u32 %v733, 4294901760
    %956 = vmatmul.f32.gmra.mxu0 %v955
    %v957 = vpop.f32.mrf.mxu0
    %v958 = vadd.f32 %v815, %v957
    %v959 = vand.u32 %v736, 4294901760
    %960 = vmatmul.f32.gmra.mxu0 %v959
    %v961 = vpop.f32.mrf.mxu0
    %v962 = vadd.f32 %v823, %v961
    %v963 = vand.u32 %v739, 4294901760
    %964 = vmatmul.f32.gmra.mxu0 %v963
    %v965 = vpop.f32.mrf.mxu0
    %v966 = vadd.f32 %v831, %v965
    %v967 = vand.u32 %v742, 4294901760
    %968 = vmatmul.f32.gmra.mxu0 %v967
    %v969 = vpop.f32.mrf.mxu0
    %v970 = vadd.f32 %v839, %v969
    %v971 = vand.u32 %v745, 4294901760
    %972 = vmatmul.f32.gmra.mxu0 %v971
    %v973 = vpop.f32.mrf.mxu0
    %v974 = vadd.f32 %v847, %v973
    %v975 = vand.u32 %v748, 4294901760
    %976 = vmatmul.f32.gmra.mxu0 %v975
    %v977 = vpop.f32.mrf.mxu0
    %v978 = vadd.f32 %v855, %v977
    %v979 = vand.u32 %v751, 4294901760
    %980 = vmatmul.f32.gmra.mxu0 %v979
    %v981 = vpop.f32.mrf.mxu0
    %v982 = vadd.f32 %v863, %v981
    %v983 = vand.u32 %v754, 4294901760
    %984 = vmatmul.f32.gmra.mxu0 %v983
    %v985 = vpop.f32.mrf.mxu0
    %v986 = vadd.f32 %v871, %v985
    %v987 = vand.u32 %v757, 4294901760
    %988 = vmatmul.f32.gmra.mxu0 %v987
    %v989 = vpop.f32.mrf.mxu0
    %v990 = vadd.f32 %v879, %v989
    %v991 = vand.u32 %v760, 4294901760
    %992 = vmatmul.f32.gmra.mxu0 %v991
    %v993 = vpop.f32.mrf.mxu0
    %v994 = vadd.f32 %v887, %v993
    %v995 = vand.u32 %v763, 4294901760
    %996 = vmatmul.f32.gmra.mxu0 %v995
    %v997 = vpop.f32.mrf.mxu0
    %v998 = vadd.f32 %v895, %v997
    %v999 = vand.u32 %v766, 4294901760
    %1000 = vmatmul.f32.gmra.mxu0 %v999
    %v1001 = vpop.f32.mrf.mxu0
    %v1002 = vadd.f32 %v903, %v1001
    %v1003 = vand.u32 %v769, 4294901760
    %1004 = vmatmul.f32.gmra.mxu0 %v1003
    %v1005 = vpop.f32.mrf.mxu0
    %v1006 = vadd.f32 %v911, %v1005
    %v1007 = vand.u32 %v772, 4294901760
    %1008 = vmatmul.f32.gmra.mxu0 %v1007
    %v1009 = vpop.f32.mrf.mxu0
    %v1010 = vadd.f32 %v919, %v1009
    %1011 = vdwg.mxu0
    %1012 = vmatpush.msra.mxu0 0.0
    %1013 = vmatpush.msra.mxu0 0.0
    %1014 = vmatpush.msra.mxu0 0.0
    %1015 = vmatpush.msra.mxu0 0.0
    %1016 = vmatpush.msra.mxu0 0.0
    %1017 = vmatpush.msra.mxu0 0.0
    %1018 = vmatpush.msra.mxu0 0.0
    %1019 = vmatpush.msra.mxu0 0.0
    %1020 = vmatpush.msra.mxu0 0.0
    %1021 = vmatpush.msra.mxu0 0.0
    %1022 = vmatpush.msra.mxu0 0.0
    %1023 = vmatpush.msra.mxu0 0.0
    %1024 = vmatpush.msra.mxu0 0.0
    %1025 = vmatpush.msra.mxu0 0.0
    %v1026 = vand.u32 %v417, 4294901760
    %v1027 = vsub.f32 %v417, %v1026
    %1028 = vmatpush.msra.mxu0 %v1027
    %v1029 = vand.u32 %v416, 4294901760
    %v1030 = vsub.f32 %v416, %v1029
    %1031 = vmatpush.msra.mxu0 %v1030
    %v1032 = vand.u32 %v727, 4294901760
    %v1033 = vsub.f32 %v727, %v1032
    %1034 = vmatmul.f32.gmra.mxu0 %v1033
    %v1035 = vpop.f32.mrf.mxu0
    %v1036 = vadd.f32 %v950, %v1035
    %v1037 = vand.u32 %v730, 4294901760
    %v1038 = vsub.f32 %v730, %v1037
    %1039 = vmatmul.f32.gmra.mxu0 %v1038
    %v1040 = vpop.f32.mrf.mxu0
    %v1041 = vadd.f32 %v954, %v1040
    %v1042 = vand.u32 %v733, 4294901760
    %v1043 = vsub.f32 %v733, %v1042
    %1044 = vmatmul.f32.gmra.mxu0 %v1043
    %v1045 = vpop.f32.mrf.mxu0
    %v1046 = vadd.f32 %v958, %v1045
    %v1047 = vand.u32 %v736, 4294901760
    %v1048 = vsub.f32 %v736, %v1047
    %1049 = vmatmul.f32.gmra.mxu0 %v1048
    %v1050 = vpop.f32.mrf.mxu0
    %v1051 = vadd.f32 %v962, %v1050
    %v1052 = vand.u32 %v739, 4294901760
    %v1053 = vsub.f32 %v739, %v1052
    %1054 = vmatmul.f32.gmra.mxu0 %v1053
    %v1055 = vpop.f32.mrf.mxu0
    %v1056 = vadd.f32 %v966, %v1055
    %v1057 = vand.u32 %v742, 4294901760
    %v1058 = vsub.f32 %v742, %v1057
    %1059 = vmatmul.f32.gmra.mxu0 %v1058
    %v1060 = vpop.f32.mrf.mxu0
    %v1061 = vadd.f32 %v970, %v1060
    %v1062 = vand.u32 %v745, 4294901760
    %v1063 = vsub.f32 %v745, %v1062
    %1064 = vmatmul.f32.gmra.mxu0 %v1063
    %v1065 = vpop.f32.mrf.mxu0
    %v1066 = vadd.f32 %v974, %v1065
    %v1067 = vand.u32 %v748, 4294901760
    %v1068 = vsub.f32 %v748, %v1067
    %1069 = vmatmul.f32.gmra.mxu0 %v1068
    %v1070 = vpop.f32.mrf.mxu0
    %v1071 = vadd.f32 %v978, %v1070
    %v1072 = vand.u32 %v751, 4294901760
    %v1073 = vsub.f32 %v751, %v1072
    %1074 = vmatmul.f32.gmra.mxu0 %v1073
    %v1075 = vpop.f32.mrf.mxu0
    %v1076 = vadd.f32 %v982, %v1075
    %v1077 = vand.u32 %v754, 4294901760
    %v1078 = vsub.f32 %v754, %v1077
    %1079 = vmatmul.f32.gmra.mxu0 %v1078
    %v1080 = vpop.f32.mrf.mxu0
    %v1081 = vadd.f32 %v986, %v1080
    %v1082 = vand.u32 %v757, 4294901760
    %v1083 = vsub.f32 %v757, %v1082
    %1084 = vmatmul.f32.gmra.mxu0 %v1083
    %v1085 = vpop.f32.mrf.mxu0
    %v1086 = vadd.f32 %v990, %v1085
    %v1087 = vand.u32 %v760, 4294901760
    %v1088 = vsub.f32 %v760, %v1087
    %1089 = vmatmul.f32.gmra.mxu0 %v1088
    %v1090 = vpop.f32.mrf.mxu0
    %v1091 = vadd.f32 %v994, %v1090
    %v1092 = vand.u32 %v763, 4294901760
    %v1093 = vsub.f32 %v763, %v1092
    %1094 = vmatmul.f32.gmra.mxu0 %v1093
    %v1095 = vpop.f32.mrf.mxu0
    %v1096 = vadd.f32 %v998, %v1095
    %v1097 = vand.u32 %v766, 4294901760
    %v1098 = vsub.f32 %v766, %v1097
    %1099 = vmatmul.f32.gmra.mxu0 %v1098
    %v1100 = vpop.f32.mrf.mxu0
    %v1101 = vadd.f32 %v1002, %v1100
    %v1102 = vand.u32 %v769, 4294901760
    %v1103 = vsub.f32 %v769, %v1102
    %1104 = vmatmul.f32.gmra.mxu0 %v1103
    %v1105 = vpop.f32.mrf.mxu0
    %v1106 = vadd.f32 %v1006, %v1105
    %v1107 = vand.u32 %v772, 4294901760
    %v1108 = vsub.f32 %v772, %v1107
    %1109 = vmatmul.f32.gmra.mxu0 %v1108
    %v1110 = vpop.f32.mrf.mxu0
    %v1111 = vadd.f32 %v1010, %v1110
    %1112 = vdwg.mxu0
    %1113 = vmatpush.msra.mxu0 0.0
    %1114 = vmatpush.msra.mxu0 0.0
    %1115 = vmatpush.msra.mxu0 0.0
    %1116 = vmatpush.msra.mxu0 0.0
    %1117 = vmatpush.msra.mxu0 0.0
    %1118 = vmatpush.msra.mxu0 0.0
    %1119 = vmatpush.msra.mxu0 0.0
    %1120 = vmatpush.msra.mxu0 0.0
    %1121 = vmatpush.msra.mxu0 0.0
    %1122 = vmatpush.msra.mxu0 0.0
    %1123 = vmatpush.msra.mxu0 0.0
    %1124 = vmatpush.msra.mxu0 0.0
    %1125 = vmatpush.msra.mxu0 0.0
    %1126 = vmatpush.msra.mxu0 0.0
    %v1127 = vand.u32 %v417, 4294901760
    %1128 = vmatpush.msra.mxu0 %v1127
    %v1129 = vand.u32 %v416, 4294901760
    %1130 = vmatpush.msra.mxu0 %v1129
    %v1131 = vand.u32 %v727, 4294901760
    %v1132 = vsub.f32 %v727, %v1131
    %v1133 = vand.u32 %v1132, 4294901760
    %1134 = vmatmul.f32.gmra.mxu0 %v1133
    %v1135 = vpop.f32.mrf.mxu0
    %v1136 = vadd.f32 %v1036, %v1135
    %v1137 = vand.u32 %v730, 4294901760
    %v1138 = vsub.f32 %v730, %v1137
    %v1139 = vand.u32 %v1138, 4294901760
    %1140 = vmatmul.f32.gmra.mxu0 %v1139
    %v1141 = vpop.f32.mrf.mxu0
    %v1142 = vadd.f32 %v1041, %v1141
    %v1143 = vand.u32 %v733, 4294901760
    %v1144 = vsub.f32 %v733, %v1143
    %v1145 = vand.u32 %v1144, 4294901760
    %1146 = vmatmul.f32.gmra.mxu0 %v1145
    %v1147 = vpop.f32.mrf.mxu0
    %v1148 = vadd.f32 %v1046, %v1147
    %v1149 = vand.u32 %v736, 4294901760
    %v1150 = vsub.f32 %v736, %v1149
    %v1151 = vand.u32 %v1150, 4294901760
    %1152 = vmatmul.f32.gmra.mxu0 %v1151
    %v1153 = vpop.f32.mrf.mxu0
    %v1154 = vadd.f32 %v1051, %v1153
    %v1155 = vand.u32 %v739, 4294901760
    %v1156 = vsub.f32 %v739, %v1155
    %v1157 = vand.u32 %v1156, 4294901760
    %1158 = vmatmul.f32.gmra.mxu0 %v1157
    %v1159 = vpop.f32.mrf.mxu0
    %v1160 = vadd.f32 %v1056, %v1159
    %v1161 = vand.u32 %v742, 4294901760
    %v1162 = vsub.f32 %v742, %v1161
    %v1163 = vand.u32 %v1162, 4294901760
    %1164 = vmatmul.f32.gmra.mxu0 %v1163
    %v1165 = vpop.f32.mrf.mxu0
    %v1166 = vadd.f32 %v1061, %v1165
    %v1167 = vand.u32 %v745, 4294901760
    %v1168 = vsub.f32 %v745, %v1167
    %v1169 = vand.u32 %v1168, 4294901760
    %1170 = vmatmul.f32.gmra.mxu0 %v1169
    %v1171 = vpop.f32.mrf.mxu0
    %v1172 = vadd.f32 %v1066, %v1171
    %v1173 = vand.u32 %v748, 4294901760
    %v1174 = vsub.f32 %v748, %v1173
    %v1175 = vand.u32 %v1174, 4294901760
    %1176 = vmatmul.f32.gmra.mxu0 %v1175
    %v1177 = vpop.f32.mrf.mxu0
    %v1178 = vadd.f32 %v1071, %v1177
    %v1179 = vand.u32 %v751, 4294901760
    %v1180 = vsub.f32 %v751, %v1179
    %v1181 = vand.u32 %v1180, 4294901760
    %1182 = vmatmul.f32.gmra.mxu0 %v1181
    %v1183 = vpop.f32.mrf.mxu0
    %v1184 = vadd.f32 %v1076, %v1183
    %v1185 = vand.u32 %v754, 4294901760
    %v1186 = vsub.f32 %v754, %v1185
    %v1187 = vand.u32 %v1186, 4294901760
    %1188 = vmatmul.f32.gmra.mxu0 %v1187
    %v1189 = vpop.f32.mrf.mxu0
    %v1190 = vadd.f32 %v1081, %v1189
    %v1191 = vand.u32 %v757, 4294901760
    %v1192 = vsub.f32 %v757, %v1191
    %v1193 = vand.u32 %v1192, 4294901760
    %1194 = vmatmul.f32.gmra.mxu0 %v1193
    %v1195 = vpop.f32.mrf.mxu0
    %v1196 = vadd.f32 %v1086, %v1195
    %v1197 = vand.u32 %v760, 4294901760
    %v1198 = vsub.f32 %v760, %v1197
    %v1199 = vand.u32 %v1198, 4294901760
    %1200 = vmatmul.f32.gmra.mxu0 %v1199
    %v1201 = vpop.f32.mrf.mxu0
    %v1202 = vadd.f32 %v1091, %v1201
    %v1203 = vand.u32 %v763, 4294901760
    %v1204 = vsub.f32 %v763, %v1203
    %v1205 = vand.u32 %v1204, 4294901760
    %1206 = vmatmul.f32.gmra.mxu0 %v1205
    %v1207 = vpop.f32.mrf.mxu0
    %v1208 = vadd.f32 %v1096, %v1207
    %v1209 = vand.u32 %v766, 4294901760
    %v1210 = vsub.f32 %v766, %v1209
    %v1211 = vand.u32 %v1210, 4294901760
    %1212 = vmatmul.f32.gmra.mxu0 %v1211
    %v1213 = vpop.f32.mrf.mxu0
    %v1214 = vadd.f32 %v1101, %v1213
    %v1215 = vand.u32 %v769, 4294901760
    %v1216 = vsub.f32 %v769, %v1215
    %v1217 = vand.u32 %v1216, 4294901760
    %1218 = vmatmul.f32.gmra.mxu0 %v1217
    %v1219 = vpop.f32.mrf.mxu0
    %v1220 = vadd.f32 %v1106, %v1219
    %v1221 = vand.u32 %v772, 4294901760
    %v1222 = vsub.f32 %v772, %v1221
    %v1223 = vand.u32 %v1222, 4294901760
    %1224 = vmatmul.f32.gmra.mxu0 %v1223
    %v1225 = vpop.f32.mrf.mxu0
    %v1226 = vadd.f32 %v1111, %v1225
    %1227 = vdwg.mxu0
    %1228 = vmatpush.msra.mxu0 0.0
    %1229 = vmatpush.msra.mxu0 0.0
    %1230 = vmatpush.msra.mxu0 0.0
    %1231 = vmatpush.msra.mxu0 0.0
    %1232 = vmatpush.msra.mxu0 0.0
    %1233 = vmatpush.msra.mxu0 0.0
    %1234 = vmatpush.msra.mxu0 0.0
    %1235 = vmatpush.msra.mxu0 0.0
    %1236 = vmatpush.msra.mxu0 0.0
    %1237 = vmatpush.msra.mxu0 0.0
    %1238 = vmatpush.msra.mxu0 0.0
    %1239 = vmatpush.msra.mxu0 0.0
    %1240 = vmatpush.msra.mxu0 0.0
    %1241 = vmatpush.msra.mxu0 0.0
    %v1242 = vand.u32 %v417, 4294901760
    %v1243 = vsub.f32 %v417, %v1242
    %v1244 = vand.u32 %v1243, 4294901760
    %1245 = vmatpush.msra.mxu0 %v1244
    %v1246 = vand.u32 %v416, 4294901760
    %v1247 = vsub.f32 %v416, %v1246
    %v1248 = vand.u32 %v1247, 4294901760
    %1249 = vmatpush.msra.mxu0 %v1248
    %v1250 = vand.u32 %v727, 4294901760
    %1251 = vmatmul.f32.gmra.mxu0 %v1250
    %v1252 = vpop.f32.mrf.mxu0
    %v1253 = vadd.f32 %v1136, %v1252
    %v1254 = vand.u32 %v730, 4294901760
    %1255 = vmatmul.f32.gmra.mxu0 %v1254
    %v1256 = vpop.f32.mrf.mxu0
    %v1257 = vadd.f32 %v1142, %v1256
    %v1258 = vand.u32 %v733, 4294901760
    %1259 = vmatmul.f32.gmra.mxu0 %v1258
    %v1260 = vpop.f32.mrf.mxu0
    %v1261 = vadd.f32 %v1148, %v1260
    %v1262 = vand.u32 %v736, 4294901760
    %1263 = vmatmul.f32.gmra.mxu0 %v1262
    %v1264 = vpop.f32.mrf.mxu0
    %v1265 = vadd.f32 %v1154, %v1264
    %v1266 = vand.u32 %v739, 4294901760
    %1267 = vmatmul.f32.gmra.mxu0 %v1266
    %v1268 = vpop.f32.mrf.mxu0
    %v1269 = vadd.f32 %v1160, %v1268
    %v1270 = vand.u32 %v742, 4294901760
    %1271 = vmatmul.f32.gmra.mxu0 %v1270
    %v1272 = vpop.f32.mrf.mxu0
    %v1273 = vadd.f32 %v1166, %v1272
    %v1274 = vand.u32 %v745, 4294901760
    %1275 = vmatmul.f32.gmra.mxu0 %v1274
    %v1276 = vpop.f32.mrf.mxu0
    %v1277 = vadd.f32 %v1172, %v1276
    %v1278 = vand.u32 %v748, 4294901760
    %1279 = vmatmul.f32.gmra.mxu0 %v1278
    %v1280 = vpop.f32.mrf.mxu0
    %v1281 = vadd.f32 %v1178, %v1280
    %v1282 = vand.u32 %v751, 4294901760
    %1283 = vmatmul.f32.gmra.mxu0 %v1282
    %v1284 = vpop.f32.mrf.mxu0
    %v1285 = vadd.f32 %v1184, %v1284
    %v1286 = vand.u32 %v754, 4294901760
    %1287 = vmatmul.f32.gmra.mxu0 %v1286
    %v1288 = vpop.f32.mrf.mxu0
    %v1289 = vadd.f32 %v1190, %v1288
    %v1290 = vand.u32 %v757, 4294901760
    %1291 = vmatmul.f32.gmra.mxu0 %v1290
    %v1292 = vpop.f32.mrf.mxu0
    %v1293 = vadd.f32 %v1196, %v1292
    %v1294 = vand.u32 %v760, 4294901760
    %1295 = vmatmul.f32.gmra.mxu0 %v1294
    %v1296 = vpop.f32.mrf.mxu0
    %v1297 = vadd.f32 %v1202, %v1296
    %v1298 = vand.u32 %v763, 4294901760
    %1299 = vmatmul.f32.gmra.mxu0 %v1298
    %v1300 = vpop.f32.mrf.mxu0
    %v1301 = vadd.f32 %v1208, %v1300
    %v1302 = vand.u32 %v766, 4294901760
    %1303 = vmatmul.f32.gmra.mxu0 %v1302
    %v1304 = vpop.f32.mrf.mxu0
    %v1305 = vadd.f32 %v1214, %v1304
    %v1306 = vand.u32 %v769, 4294901760
    %1307 = vmatmul.f32.gmra.mxu0 %v1306
    %v1308 = vpop.f32.mrf.mxu0
    %v1309 = vadd.f32 %v1220, %v1308
    %v1310 = vand.u32 %v772, 4294901760
    %1311 = vmatmul.f32.gmra.mxu0 %v1310
    %v1312 = vpop.f32.mrf.mxu0
    %v1313 = vadd.f32 %v1226, %v1312
    %1314 = vdwg.mxu0
    %1315 = vmatpush.msra.mxu0 0.0
    %1316 = vmatpush.msra.mxu0 0.0
    %1317 = vmatpush.msra.mxu0 0.0
    %1318 = vmatpush.msra.mxu0 0.0
    %1319 = vmatpush.msra.mxu0 0.0
    %1320 = vmatpush.msra.mxu0 0.0
    %1321 = vmatpush.msra.mxu0 0.0
    %1322 = vmatpush.msra.mxu0 0.0
    %1323 = vmatpush.msra.mxu0 0.0
    %1324 = vmatpush.msra.mxu0 0.0
    %1325 = vmatpush.msra.mxu0 0.0
    %1326 = vmatpush.msra.mxu0 0.0
    %1327 = vmatpush.msra.mxu0 0.0
    %1328 = vmatpush.msra.mxu0 0.0
    %v1329 = vand.u32 %v417, 4294901760
    %1330 = vmatpush.msra.mxu0 %v1329
    %v1331 = vand.u32 %v416, 4294901760
    %1332 = vmatpush.msra.mxu0 %v1331
    %v1333 = vand.u32 %v727, 4294901760
    %1334 = vmatmul.f32.gmra.mxu0 %v1333
    %v1335 = vpop.f32.mrf.mxu0
    %v1336 = vadd.f32 %v1253, %v1335
    %v1337 = vand.u32 %v730, 4294901760
    %1338 = vmatmul.f32.gmra.mxu0 %v1337
    %v1339 = vpop.f32.mrf.mxu0
    %v1340 = vadd.f32 %v1257, %v1339
    %v1341 = vand.u32 %v733, 4294901760
    %1342 = vmatmul.f32.gmra.mxu0 %v1341
    %v1343 = vpop.f32.mrf.mxu0
    %v1344 = vadd.f32 %v1261, %v1343
    %v1345 = vand.u32 %v736, 4294901760
    %1346 = vmatmul.f32.gmra.mxu0 %v1345
    %v1347 = vpop.f32.mrf.mxu0
    %v1348 = vadd.f32 %v1265, %v1347
    %v1349 = vand.u32 %v739, 4294901760
    %1350 = vmatmul.f32.gmra.mxu0 %v1349
    %v1351 = vpop.f32.mrf.mxu0
    %v1352 = vadd.f32 %v1269, %v1351
    %v1353 = vand.u32 %v742, 4294901760
    %1354 = vmatmul.f32.gmra.mxu0 %v1353
    %v1355 = vpop.f32.mrf.mxu0
    %v1356 = vadd.f32 %v1273, %v1355
    %v1357 = vand.u32 %v745, 4294901760
    %1358 = vmatmul.f32.gmra.mxu0 %v1357
    %v1359 = vpop.f32.mrf.mxu0
    %v1360 = vadd.f32 %v1277, %v1359
    %v1361 = vand.u32 %v748, 4294901760
    %1362 = vmatmul.f32.gmra.mxu0 %v1361
    %v1363 = vpop.f32.mrf.mxu0
    %v1364 = vadd.f32 %v1281, %v1363
    %v1365 = vand.u32 %v751, 4294901760
    %1366 = vmatmul.f32.gmra.mxu0 %v1365
    %v1367 = vpop.f32.mrf.mxu0
    %v1368 = vadd.f32 %v1285, %v1367
    %v1369 = vand.u32 %v754, 4294901760
    %1370 = vmatmul.f32.gmra.mxu0 %v1369
    %v1371 = vpop.f32.mrf.mxu0
    %v1372 = vadd.f32 %v1289, %v1371
    %v1373 = vand.u32 %v757, 4294901760
    %1374 = vmatmul.f32.gmra.mxu0 %v1373
    %v1375 = vpop.f32.mrf.mxu0
    %v1376 = vadd.f32 %v1293, %v1375
    %v1377 = vand.u32 %v760, 4294901760
    %1378 = vmatmul.f32.gmra.mxu0 %v1377
    %v1379 = vpop.f32.mrf.mxu0
    %v1380 = vadd.f32 %v1297, %v1379
    %v1381 = vand.u32 %v763, 4294901760
    %1382 = vmatmul.f32.gmra.mxu0 %v1381
    %v1383 = vpop.f32.mrf.mxu0
    %v1384 = vadd.f32 %v1301, %v1383
    %v1385 = vand.u32 %v766, 4294901760
    %1386 = vmatmul.f32.gmra.mxu0 %v1385
    %v1387 = vpop.f32.mrf.mxu0
    %v1388 = vadd.f32 %v1305, %v1387
    %v1389 = vand.u32 %v769, 4294901760
    %1390 = vmatmul.f32.gmra.mxu0 %v1389
    %v1391 = vpop.f32.mrf.mxu0
    %v1392 = vadd.f32 %v1309, %v1391
    %v1393 = vand.u32 %v772, 4294901760
    %1394 = vmatmul.f32.gmra.mxu0 %v1393
    %v1395 = vpop.f32.mrf.mxu0
    %v1396 = vadd.f32 %v1313, %v1395
    %1397 = vdwg.mxu0
    %1399 = vset.pattern.permute.xlu0 0
    %1400 = vperm.xlu0 %1399, %v709
    %v1401 = vpop.permute.xlu0 %1400
    %1404 = vset.pattern.permute.xlu0 0
    %1405 = vperm.xlu0 %1404, %v710
    %v1406 = vpop.permute.xlu0 %1405
    %1409 = vset.pattern.permute.xlu0 0
    %1410 = vperm.xlu0 %1409, %v711
    %v1411 = vpop.permute.xlu0 %1410
    %1414 = vset.pattern.permute.xlu0 0
    %1415 = vperm.xlu0 %1414, %v712
    %v1416 = vpop.permute.xlu0 %1415
    %1419 = vset.pattern.permute.xlu0 0
    %1420 = vperm.xlu0 %1419, %v713
    %v1421 = vpop.permute.xlu0 %1420
    %1424 = vset.pattern.permute.xlu0 0
    %1425 = vperm.xlu0 %1424, %v714
    %v1426 = vpop.permute.xlu0 %1425
    %1429 = vset.pattern.permute.xlu0 0
    %1430 = vperm.xlu0 %1429, %v715
    %v1431 = vpop.permute.xlu0 %1430
    %1434 = vset.pattern.permute.xlu0 0
    %1435 = vperm.xlu0 %1434, %v716
    %v1436 = vpop.permute.xlu0 %1435
    %1439 = vset.pattern.permute.xlu0 0
    %1440 = vperm.xlu0 %1439, %v717
    %v1441 = vpop.permute.xlu0 %1440
    %1444 = vset.pattern.permute.xlu0 0
    %1445 = vperm.xlu0 %1444, %v718
    %v1446 = vpop.permute.xlu0 %1445
    %1449 = vset.pattern.permute.xlu0 0
    %1450 = vperm.xlu0 %1449, %v719
    %v1451 = vpop.permute.xlu0 %1450
    %1454 = vset.pattern.permute.xlu0 0
    %1455 = vperm.xlu0 %1454, %v720
    %v1456 = vpop.permute.xlu0 %1455
    %1459 = vset.pattern.permute.xlu0 0
    %1460 = vperm.xlu0 %1459, %v721
    %v1461 = vpop.permute.xlu0 %1460
    %1464 = vset.pattern.permute.xlu0 0
    %1465 = vperm.xlu0 %1464, %v722
    %v1466 = vpop.permute.xlu0 %1465
    %1469 = vset.pattern.permute.xlu0 0
    %1470 = vperm.xlu0 %1469, %v723
    %v1471 = vpop.permute.xlu0 %1470
    %1474 = vset.pattern.permute.xlu0 0
    %1475 = vperm.xlu0 %1474, %v724
    %v1476 = vpop.permute.xlu0 %1475
    %v1478 = vmul.f32 %v1401, %v1336
    %v1479 = vmul.f32 %v1406, %v1340
    %v1480 = vmul.f32 %v1411, %v1344
    %v1481 = vmul.f32 %v1416, %v1348
    %v1482 = vmul.f32 %v1421, %v1352
    %v1483 = vmul.f32 %v1426, %v1356
    %v1484 = vmul.f32 %v1431, %v1360
    %v1485 = vmul.f32 %v1436, %v1364
    %v1486 = vmul.f32 %v1441, %v1368
    %v1487 = vmul.f32 %v1446, %v1372
    %v1488 = vmul.f32 %v1451, %v1376
    %v1489 = vmul.f32 %v1456, %v1380
    %v1490 = vmul.f32 %v1461, %v1384
    %v1491 = vmul.f32 %v1466, %v1388
    %v1492 = vmul.f32 %v1471, %v1392
    %v1493 = vmul.f32 %v1476, %v1396
    %v1494 = vand.u32 %v399, 4294901760
    %1495 = vmatpush.msra.mxu0 %v1494
    %v1496 = vand.u32 %v398, 4294901760
    %1497 = vmatpush.msra.mxu0 %v1496
    %v1498 = vand.u32 %v397, 4294901760
    %1499 = vmatpush.msra.mxu0 %v1498
    %v1500 = vand.u32 %v396, 4294901760
    %1501 = vmatpush.msra.mxu0 %v1500
    %v1502 = vand.u32 %v395, 4294901760
    %1503 = vmatpush.msra.mxu0 %v1502
    %v1504 = vand.u32 %v394, 4294901760
    %1505 = vmatpush.msra.mxu0 %v1504
    %v1506 = vand.u32 %v393, 4294901760
    %1507 = vmatpush.msra.mxu0 %v1506
    %v1508 = vand.u32 %v392, 4294901760
    %1509 = vmatpush.msra.mxu0 %v1508
    %v1510 = vand.u32 %v391, 4294901760
    %1511 = vmatpush.msra.mxu0 %v1510
    %v1512 = vand.u32 %v390, 4294901760
    %1513 = vmatpush.msra.mxu0 %v1512
    %v1514 = vand.u32 %v389, 4294901760
    %1515 = vmatpush.msra.mxu0 %v1514
    %v1516 = vand.u32 %v388, 4294901760
    %1517 = vmatpush.msra.mxu0 %v1516
    %v1518 = vand.u32 %v387, 4294901760
    %1519 = vmatpush.msra.mxu0 %v1518
    %v1520 = vand.u32 %v386, 4294901760
    %1521 = vmatpush.msra.mxu0 %v1520
    %v1522 = vand.u32 %v385, 4294901760
    %1523 = vmatpush.msra.mxu0 %v1522
    %v1524 = vand.u32 %v384, 4294901760
    %1525 = vmatpush.msra.mxu0 %v1524
    %v1526 = vand.u32 %v368, 4294901760
    %v1527 = vsub.f32 %v368, %v1526
    %v1528 = vand.u32 %v1527, 4294901760
    %v1529 = vsub.f32 %v1527, %v1528
    %v1530 = vand.u32 %v1529, 4294901760
    %1531 = vmatmul.f32.gmra.mxu0 %v1530
    %v1532 = vpop.f32.mrf.mxu0
    %v1533 = vadd.f32 %v1478, %v1532
    %v1534 = vand.u32 %v369, 4294901760
    %v1535 = vsub.f32 %v369, %v1534
    %v1536 = vand.u32 %v1535, 4294901760
    %v1537 = vsub.f32 %v1535, %v1536
    %v1538 = vand.u32 %v1537, 4294901760
    %1539 = vmatmul.f32.gmra.mxu0 %v1538
    %v1540 = vpop.f32.mrf.mxu0
    %v1541 = vadd.f32 %v1479, %v1540
    %v1542 = vand.u32 %v370, 4294901760
    %v1543 = vsub.f32 %v370, %v1542
    %v1544 = vand.u32 %v1543, 4294901760
    %v1545 = vsub.f32 %v1543, %v1544
    %v1546 = vand.u32 %v1545, 4294901760
    %1547 = vmatmul.f32.gmra.mxu0 %v1546
    %v1548 = vpop.f32.mrf.mxu0
    %v1549 = vadd.f32 %v1480, %v1548
    %v1550 = vand.u32 %v371, 4294901760
    %v1551 = vsub.f32 %v371, %v1550
    %v1552 = vand.u32 %v1551, 4294901760
    %v1553 = vsub.f32 %v1551, %v1552
    %v1554 = vand.u32 %v1553, 4294901760
    %1555 = vmatmul.f32.gmra.mxu0 %v1554
    %v1556 = vpop.f32.mrf.mxu0
    %v1557 = vadd.f32 %v1481, %v1556
    %v1558 = vand.u32 %v372, 4294901760
    %v1559 = vsub.f32 %v372, %v1558
    %v1560 = vand.u32 %v1559, 4294901760
    %v1561 = vsub.f32 %v1559, %v1560
    %v1562 = vand.u32 %v1561, 4294901760
    %1563 = vmatmul.f32.gmra.mxu0 %v1562
    %v1564 = vpop.f32.mrf.mxu0
    %v1565 = vadd.f32 %v1482, %v1564
    %v1566 = vand.u32 %v373, 4294901760
    %v1567 = vsub.f32 %v373, %v1566
    %v1568 = vand.u32 %v1567, 4294901760
    %v1569 = vsub.f32 %v1567, %v1568
    %v1570 = vand.u32 %v1569, 4294901760
    %1571 = vmatmul.f32.gmra.mxu0 %v1570
    %v1572 = vpop.f32.mrf.mxu0
    %v1573 = vadd.f32 %v1483, %v1572
    %v1574 = vand.u32 %v374, 4294901760
    %v1575 = vsub.f32 %v374, %v1574
    %v1576 = vand.u32 %v1575, 4294901760
    %v1577 = vsub.f32 %v1575, %v1576
    %v1578 = vand.u32 %v1577, 4294901760
    %1579 = vmatmul.f32.gmra.mxu0 %v1578
    %v1580 = vpop.f32.mrf.mxu0
    %v1581 = vadd.f32 %v1484, %v1580
    %v1582 = vand.u32 %v375, 4294901760
    %v1583 = vsub.f32 %v375, %v1582
    %v1584 = vand.u32 %v1583, 4294901760
    %v1585 = vsub.f32 %v1583, %v1584
    %v1586 = vand.u32 %v1585, 4294901760
    %1587 = vmatmul.f32.gmra.mxu0 %v1586
    %v1588 = vpop.f32.mrf.mxu0
    %v1589 = vadd.f32 %v1485, %v1588
    %v1590 = vand.u32 %v376, 4294901760
    %v1591 = vsub.f32 %v376, %v1590
    %v1592 = vand.u32 %v1591, 4294901760
    %v1593 = vsub.f32 %v1591, %v1592
    %v1594 = vand.u32 %v1593, 4294901760
    %1595 = vmatmul.f32.gmra.mxu0 %v1594
    %v1596 = vpop.f32.mrf.mxu0
    %v1597 = vadd.f32 %v1486, %v1596
    %v1598 = vand.u32 %v377, 4294901760
    %v1599 = vsub.f32 %v377, %v1598
    %v1600 = vand.u32 %v1599, 4294901760
    %v1601 = vsub.f32 %v1599, %v1600
    %v1602 = vand.u32 %v1601, 4294901760
    %1603 = vmatmul.f32.gmra.mxu0 %v1602
    %v1604 = vpop.f32.mrf.mxu0
    %v1605 = vadd.f32 %v1487, %v1604
    %v1606 = vand.u32 %v378, 4294901760
    %v1607 = vsub.f32 %v378, %v1606
    %v1608 = vand.u32 %v1607, 4294901760
    %v1609 = vsub.f32 %v1607, %v1608
    %v1610 = vand.u32 %v1609, 4294901760
    %1611 = vmatmul.f32.gmra.mxu0 %v1610
    %v1612 = vpop.f32.mrf.mxu0
    %v1613 = vadd.f32 %v1488, %v1612
    %v1614 = vand.u32 %v379, 4294901760
    %v1615 = vsub.f32 %v379, %v1614
    %v1616 = vand.u32 %v1615, 4294901760
    %v1617 = vsub.f32 %v1615, %v1616
    %v1618 = vand.u32 %v1617, 4294901760
    %1619 = vmatmul.f32.gmra.mxu0 %v1618
    %v1620 = vpop.f32.mrf.mxu0
    %v1621 = vadd.f32 %v1489, %v1620
    %v1622 = vand.u32 %v380, 4294901760
    %v1623 = vsub.f32 %v380, %v1622
    %v1624 = vand.u32 %v1623, 4294901760
    %v1625 = vsub.f32 %v1623, %v1624
    %v1626 = vand.u32 %v1625, 4294901760
    %1627 = vmatmul.f32.gmra.mxu0 %v1626
    %v1628 = vpop.f32.mrf.mxu0
    %v1629 = vadd.f32 %v1490, %v1628
    %v1630 = vand.u32 %v381, 4294901760
    %v1631 = vsub.f32 %v381, %v1630
    %v1632 = vand.u32 %v1631, 4294901760
    %v1633 = vsub.f32 %v1631, %v1632
    %v1634 = vand.u32 %v1633, 4294901760
    %1635 = vmatmul.f32.gmra.mxu0 %v1634
    %v1636 = vpop.f32.mrf.mxu0
    %v1637 = vadd.f32 %v1491, %v1636
    %v1638 = vand.u32 %v382, 4294901760
    %v1639 = vsub.f32 %v382, %v1638
    %v1640 = vand.u32 %v1639, 4294901760
    %v1641 = vsub.f32 %v1639, %v1640
    %v1642 = vand.u32 %v1641, 4294901760
    %1643 = vmatmul.f32.gmra.mxu0 %v1642
    %v1644 = vpop.f32.mrf.mxu0
    %v1645 = vadd.f32 %v1492, %v1644
    %v1646 = vand.u32 %v383, 4294901760
    %v1647 = vsub.f32 %v383, %v1646
    %v1648 = vand.u32 %v1647, 4294901760
    %v1649 = vsub.f32 %v1647, %v1648
    %v1650 = vand.u32 %v1649, 4294901760
    %1651 = vmatmul.f32.gmra.mxu0 %v1650
    %v1652 = vpop.f32.mrf.mxu0
    %v1653 = vadd.f32 %v1493, %v1652
    %1654 = vdwg.mxu0
    %v1655 = vand.u32 %v399, 4294901760
    %v1656 = vsub.f32 %v399, %v1655
    %v1657 = vand.u32 %v1656, 4294901760
    %v1658 = vsub.f32 %v1656, %v1657
    %v1659 = vand.u32 %v1658, 4294901760
    %1660 = vmatpush.msra.mxu0 %v1659
    %v1661 = vand.u32 %v398, 4294901760
    %v1662 = vsub.f32 %v398, %v1661
    %v1663 = vand.u32 %v1662, 4294901760
    %v1664 = vsub.f32 %v1662, %v1663
    %v1665 = vand.u32 %v1664, 4294901760
    %1666 = vmatpush.msra.mxu0 %v1665
    %v1667 = vand.u32 %v397, 4294901760
    %v1668 = vsub.f32 %v397, %v1667
    %v1669 = vand.u32 %v1668, 4294901760
    %v1670 = vsub.f32 %v1668, %v1669
    %v1671 = vand.u32 %v1670, 4294901760
    %1672 = vmatpush.msra.mxu0 %v1671
    %v1673 = vand.u32 %v396, 4294901760
    %v1674 = vsub.f32 %v396, %v1673
    %v1675 = vand.u32 %v1674, 4294901760
    %v1676 = vsub.f32 %v1674, %v1675
    %v1677 = vand.u32 %v1676, 4294901760
    %1678 = vmatpush.msra.mxu0 %v1677
    %v1679 = vand.u32 %v395, 4294901760
    %v1680 = vsub.f32 %v395, %v1679
    %v1681 = vand.u32 %v1680, 4294901760
    %v1682 = vsub.f32 %v1680, %v1681
    %v1683 = vand.u32 %v1682, 4294901760
    %1684 = vmatpush.msra.mxu0 %v1683
    %v1685 = vand.u32 %v394, 4294901760
    %v1686 = vsub.f32 %v394, %v1685
    %v1687 = vand.u32 %v1686, 4294901760
    %v1688 = vsub.f32 %v1686, %v1687
    %v1689 = vand.u32 %v1688, 4294901760
    %1690 = vmatpush.msra.mxu0 %v1689
    %v1691 = vand.u32 %v393, 4294901760
    %v1692 = vsub.f32 %v393, %v1691
    %v1693 = vand.u32 %v1692, 4294901760
    %v1694 = vsub.f32 %v1692, %v1693
    %v1695 = vand.u32 %v1694, 4294901760
    %1696 = vmatpush.msra.mxu0 %v1695
    %v1697 = vand.u32 %v392, 4294901760
    %v1698 = vsub.f32 %v392, %v1697
    %v1699 = vand.u32 %v1698, 4294901760
    %v1700 = vsub.f32 %v1698, %v1699
    %v1701 = vand.u32 %v1700, 4294901760
    %1702 = vmatpush.msra.mxu0 %v1701
    %v1703 = vand.u32 %v391, 4294901760
    %v1704 = vsub.f32 %v391, %v1703
    %v1705 = vand.u32 %v1704, 4294901760
    %v1706 = vsub.f32 %v1704, %v1705
    %v1707 = vand.u32 %v1706, 4294901760
    %1708 = vmatpush.msra.mxu0 %v1707
    %v1709 = vand.u32 %v390, 4294901760
    %v1710 = vsub.f32 %v390, %v1709
    %v1711 = vand.u32 %v1710, 4294901760
    %v1712 = vsub.f32 %v1710, %v1711
    %v1713 = vand.u32 %v1712, 4294901760
    %1714 = vmatpush.msra.mxu0 %v1713
    %v1715 = vand.u32 %v389, 4294901760
    %v1716 = vsub.f32 %v389, %v1715
    %v1717 = vand.u32 %v1716, 4294901760
    %v1718 = vsub.f32 %v1716, %v1717
    %v1719 = vand.u32 %v1718, 4294901760
    %1720 = vmatpush.msra.mxu0 %v1719
    %v1721 = vand.u32 %v388, 4294901760
    %v1722 = vsub.f32 %v388, %v1721
    %v1723 = vand.u32 %v1722, 4294901760
    %v1724 = vsub.f32 %v1722, %v1723
    %v1725 = vand.u32 %v1724, 4294901760
    %1726 = vmatpush.msra.mxu0 %v1725
    %v1727 = vand.u32 %v387, 4294901760
    %v1728 = vsub.f32 %v387, %v1727
    %v1729 = vand.u32 %v1728, 4294901760
    %v1730 = vsub.f32 %v1728, %v1729
    %v1731 = vand.u32 %v1730, 4294901760
    %1732 = vmatpush.msra.mxu0 %v1731
    %v1733 = vand.u32 %v386, 4294901760
    %v1734 = vsub.f32 %v386, %v1733
    %v1735 = vand.u32 %v1734, 4294901760
    %v1736 = vsub.f32 %v1734, %v1735
    %v1737 = vand.u32 %v1736, 4294901760
    %1738 = vmatpush.msra.mxu0 %v1737
    %v1739 = vand.u32 %v385, 4294901760
    %v1740 = vsub.f32 %v385, %v1739
    %v1741 = vand.u32 %v1740, 4294901760
    %v1742 = vsub.f32 %v1740, %v1741
    %v1743 = vand.u32 %v1742, 4294901760
    %1744 = vmatpush.msra.mxu0 %v1743
    %v1745 = vand.u32 %v384, 4294901760
    %v1746 = vsub.f32 %v384, %v1745
    %v1747 = vand.u32 %v1746, 4294901760
    %v1748 = vsub.f32 %v1746, %v1747
    %v1749 = vand.u32 %v1748, 4294901760
    %1750 = vmatpush.msra.mxu0 %v1749
    %v1751 = vand.u32 %v368, 4294901760
    %1752 = vmatmul.f32.gmra.mxu0 %v1751
    %v1753 = vpop.f32.mrf.mxu0
    %v1754 = vadd.f32 %v1533, %v1753
    %v1755 = vand.u32 %v369, 4294901760
    %1756 = vmatmul.f32.gmra.mxu0 %v1755
    %v1757 = vpop.f32.mrf.mxu0
    %v1758 = vadd.f32 %v1541, %v1757
    %v1759 = vand.u32 %v370, 4294901760
    %1760 = vmatmul.f32.gmra.mxu0 %v1759
    %v1761 = vpop.f32.mrf.mxu0
    %v1762 = vadd.f32 %v1549, %v1761
    %v1763 = vand.u32 %v371, 4294901760
    %1764 = vmatmul.f32.gmra.mxu0 %v1763
    %v1765 = vpop.f32.mrf.mxu0
    %v1766 = vadd.f32 %v1557, %v1765
    %v1767 = vand.u32 %v372, 4294901760
    %1768 = vmatmul.f32.gmra.mxu0 %v1767
    %v1769 = vpop.f32.mrf.mxu0
    %v1770 = vadd.f32 %v1565, %v1769
    %v1771 = vand.u32 %v373, 4294901760
    %1772 = vmatmul.f32.gmra.mxu0 %v1771
    %v1773 = vpop.f32.mrf.mxu0
    %v1774 = vadd.f32 %v1573, %v1773
    %v1775 = vand.u32 %v374, 4294901760
    %1776 = vmatmul.f32.gmra.mxu0 %v1775
    %v1777 = vpop.f32.mrf.mxu0
    %v1778 = vadd.f32 %v1581, %v1777
    %v1779 = vand.u32 %v375, 4294901760
    %1780 = vmatmul.f32.gmra.mxu0 %v1779
    %v1781 = vpop.f32.mrf.mxu0
    %v1782 = vadd.f32 %v1589, %v1781
    %v1783 = vand.u32 %v376, 4294901760
    %1784 = vmatmul.f32.gmra.mxu0 %v1783
    %v1785 = vpop.f32.mrf.mxu0
    %v1786 = vadd.f32 %v1597, %v1785
    %v1787 = vand.u32 %v377, 4294901760
    %1788 = vmatmul.f32.gmra.mxu0 %v1787
    %v1789 = vpop.f32.mrf.mxu0
    %v1790 = vadd.f32 %v1605, %v1789
    %v1791 = vand.u32 %v378, 4294901760
    %1792 = vmatmul.f32.gmra.mxu0 %v1791
    %v1793 = vpop.f32.mrf.mxu0
    %v1794 = vadd.f32 %v1613, %v1793
    %v1795 = vand.u32 %v379, 4294901760
    %1796 = vmatmul.f32.gmra.mxu0 %v1795
    %v1797 = vpop.f32.mrf.mxu0
    %v1798 = vadd.f32 %v1621, %v1797
    %v1799 = vand.u32 %v380, 4294901760
    %1800 = vmatmul.f32.gmra.mxu0 %v1799
    %v1801 = vpop.f32.mrf.mxu0
    %v1802 = vadd.f32 %v1629, %v1801
    %v1803 = vand.u32 %v381, 4294901760
    %1804 = vmatmul.f32.gmra.mxu0 %v1803
    %v1805 = vpop.f32.mrf.mxu0
    %v1806 = vadd.f32 %v1637, %v1805
    %v1807 = vand.u32 %v382, 4294901760
    %1808 = vmatmul.f32.gmra.mxu0 %v1807
    %v1809 = vpop.f32.mrf.mxu0
    %v1810 = vadd.f32 %v1645, %v1809
    %v1811 = vand.u32 %v383, 4294901760
    %1812 = vmatmul.f32.gmra.mxu0 %v1811
    %v1813 = vpop.f32.mrf.mxu0
    %v1814 = vadd.f32 %v1653, %v1813
    %1815 = vdwg.mxu0
    %v1816 = vand.u32 %v399, 4294901760
    %v1817 = vsub.f32 %v399, %v1816
    %1818 = vmatpush.msra.mxu0 %v1817
    %v1819 = vand.u32 %v398, 4294901760
    %v1820 = vsub.f32 %v398, %v1819
    %1821 = vmatpush.msra.mxu0 %v1820
    %v1822 = vand.u32 %v397, 4294901760
    %v1823 = vsub.f32 %v397, %v1822
    %1824 = vmatpush.msra.mxu0 %v1823
    %v1825 = vand.u32 %v396, 4294901760
    %v1826 = vsub.f32 %v396, %v1825
    %1827 = vmatpush.msra.mxu0 %v1826
    %v1828 = vand.u32 %v395, 4294901760
    %v1829 = vsub.f32 %v395, %v1828
    %1830 = vmatpush.msra.mxu0 %v1829
    %v1831 = vand.u32 %v394, 4294901760
    %v1832 = vsub.f32 %v394, %v1831
    %1833 = vmatpush.msra.mxu0 %v1832
    %v1834 = vand.u32 %v393, 4294901760
    %v1835 = vsub.f32 %v393, %v1834
    %1836 = vmatpush.msra.mxu0 %v1835
    %v1837 = vand.u32 %v392, 4294901760
    %v1838 = vsub.f32 %v392, %v1837
    %1839 = vmatpush.msra.mxu0 %v1838
    %v1840 = vand.u32 %v391, 4294901760
    %v1841 = vsub.f32 %v391, %v1840
    %1842 = vmatpush.msra.mxu0 %v1841
    %v1843 = vand.u32 %v390, 4294901760
    %v1844 = vsub.f32 %v390, %v1843
    %1845 = vmatpush.msra.mxu0 %v1844
    %v1846 = vand.u32 %v389, 4294901760
    %v1847 = vsub.f32 %v389, %v1846
    %1848 = vmatpush.msra.mxu0 %v1847
    %v1849 = vand.u32 %v388, 4294901760
    %v1850 = vsub.f32 %v388, %v1849
    %1851 = vmatpush.msra.mxu0 %v1850
    %v1852 = vand.u32 %v387, 4294901760
    %v1853 = vsub.f32 %v387, %v1852
    %1854 = vmatpush.msra.mxu0 %v1853
    %v1855 = vand.u32 %v386, 4294901760
    %v1856 = vsub.f32 %v386, %v1855
    %1857 = vmatpush.msra.mxu0 %v1856
    %v1858 = vand.u32 %v385, 4294901760
    %v1859 = vsub.f32 %v385, %v1858
    %1860 = vmatpush.msra.mxu0 %v1859
    %v1861 = vand.u32 %v384, 4294901760
    %v1862 = vsub.f32 %v384, %v1861
    %1863 = vmatpush.msra.mxu0 %v1862
    %v1864 = vand.u32 %v368, 4294901760
    %v1865 = vsub.f32 %v368, %v1864
    %1866 = vmatmul.f32.gmra.mxu0 %v1865
    %v1867 = vpop.f32.mrf.mxu0
    %v1868 = vadd.f32 %v1754, %v1867
    %v1869 = vand.u32 %v369, 4294901760
    %v1870 = vsub.f32 %v369, %v1869
    %1871 = vmatmul.f32.gmra.mxu0 %v1870
    %v1872 = vpop.f32.mrf.mxu0
    %v1873 = vadd.f32 %v1758, %v1872
    %v1874 = vand.u32 %v370, 4294901760
    %v1875 = vsub.f32 %v370, %v1874
    %1876 = vmatmul.f32.gmra.mxu0 %v1875
    %v1877 = vpop.f32.mrf.mxu0
    %v1878 = vadd.f32 %v1762, %v1877
    %v1879 = vand.u32 %v371, 4294901760
    %v1880 = vsub.f32 %v371, %v1879
    %1881 = vmatmul.f32.gmra.mxu0 %v1880
    %v1882 = vpop.f32.mrf.mxu0
    %v1883 = vadd.f32 %v1766, %v1882
    %v1884 = vand.u32 %v372, 4294901760
    %v1885 = vsub.f32 %v372, %v1884
    %1886 = vmatmul.f32.gmra.mxu0 %v1885
    %v1887 = vpop.f32.mrf.mxu0
    %v1888 = vadd.f32 %v1770, %v1887
    %v1889 = vand.u32 %v373, 4294901760
    %v1890 = vsub.f32 %v373, %v1889
    %1891 = vmatmul.f32.gmra.mxu0 %v1890
    %v1892 = vpop.f32.mrf.mxu0
    %v1893 = vadd.f32 %v1774, %v1892
    %v1894 = vand.u32 %v374, 4294901760
    %v1895 = vsub.f32 %v374, %v1894
    %1896 = vmatmul.f32.gmra.mxu0 %v1895
    %v1897 = vpop.f32.mrf.mxu0
    %v1898 = vadd.f32 %v1778, %v1897
    %v1899 = vand.u32 %v375, 4294901760
    %v1900 = vsub.f32 %v375, %v1899
    %1901 = vmatmul.f32.gmra.mxu0 %v1900
    %v1902 = vpop.f32.mrf.mxu0
    %v1903 = vadd.f32 %v1782, %v1902
    %v1904 = vand.u32 %v376, 4294901760
    %v1905 = vsub.f32 %v376, %v1904
    %1906 = vmatmul.f32.gmra.mxu0 %v1905
    %v1907 = vpop.f32.mrf.mxu0
    %v1908 = vadd.f32 %v1786, %v1907
    %v1909 = vand.u32 %v377, 4294901760
    %v1910 = vsub.f32 %v377, %v1909
    %1911 = vmatmul.f32.gmra.mxu0 %v1910
    %v1912 = vpop.f32.mrf.mxu0
    %v1913 = vadd.f32 %v1790, %v1912
    %v1914 = vand.u32 %v378, 4294901760
    %v1915 = vsub.f32 %v378, %v1914
    %1916 = vmatmul.f32.gmra.mxu0 %v1915
    %v1917 = vpop.f32.mrf.mxu0
    %v1918 = vadd.f32 %v1794, %v1917
    %v1919 = vand.u32 %v379, 4294901760
    %v1920 = vsub.f32 %v379, %v1919
    %1921 = vmatmul.f32.gmra.mxu0 %v1920
    %v1922 = vpop.f32.mrf.mxu0
    %v1923 = vadd.f32 %v1798, %v1922
    %v1924 = vand.u32 %v380, 4294901760
    %v1925 = vsub.f32 %v380, %v1924
    %1926 = vmatmul.f32.gmra.mxu0 %v1925
    %v1927 = vpop.f32.mrf.mxu0
    %v1928 = vadd.f32 %v1802, %v1927
    %v1929 = vand.u32 %v381, 4294901760
    %v1930 = vsub.f32 %v381, %v1929
    %1931 = vmatmul.f32.gmra.mxu0 %v1930
    %v1932 = vpop.f32.mrf.mxu0
    %v1933 = vadd.f32 %v1806, %v1932
    %v1934 = vand.u32 %v382, 4294901760
    %v1935 = vsub.f32 %v382, %v1934
    %1936 = vmatmul.f32.gmra.mxu0 %v1935
    %v1937 = vpop.f32.mrf.mxu0
    %v1938 = vadd.f32 %v1810, %v1937
    %v1939 = vand.u32 %v383, 4294901760
    %v1940 = vsub.f32 %v383, %v1939
    %1941 = vmatmul.f32.gmra.mxu0 %v1940
    %v1942 = vpop.f32.mrf.mxu0
    %v1943 = vadd.f32 %v1814, %v1942
    %1944 = vdwg.mxu0
    %v1945 = vand.u32 %v399, 4294901760
    %1946 = vmatpush.msra.mxu0 %v1945
    %v1947 = vand.u32 %v398, 4294901760
    %1948 = vmatpush.msra.mxu0 %v1947
    %v1949 = vand.u32 %v397, 4294901760
    %1950 = vmatpush.msra.mxu0 %v1949
    %v1951 = vand.u32 %v396, 4294901760
    %1952 = vmatpush.msra.mxu0 %v1951
    %v1953 = vand.u32 %v395, 4294901760
    %1954 = vmatpush.msra.mxu0 %v1953
    %v1955 = vand.u32 %v394, 4294901760
    %1956 = vmatpush.msra.mxu0 %v1955
    %v1957 = vand.u32 %v393, 4294901760
    %1958 = vmatpush.msra.mxu0 %v1957
    %v1959 = vand.u32 %v392, 4294901760
    %1960 = vmatpush.msra.mxu0 %v1959
    %v1961 = vand.u32 %v391, 4294901760
    %1962 = vmatpush.msra.mxu0 %v1961
    %v1963 = vand.u32 %v390, 4294901760
    %1964 = vmatpush.msra.mxu0 %v1963
    %v1965 = vand.u32 %v389, 4294901760
    %1966 = vmatpush.msra.mxu0 %v1965
    %v1967 = vand.u32 %v388, 4294901760
    %1968 = vmatpush.msra.mxu0 %v1967
    %v1969 = vand.u32 %v387, 4294901760
    %1970 = vmatpush.msra.mxu0 %v1969
    %v1971 = vand.u32 %v386, 4294901760
    %1972 = vmatpush.msra.mxu0 %v1971
    %v1973 = vand.u32 %v385, 4294901760
    %1974 = vmatpush.msra.mxu0 %v1973
    %v1975 = vand.u32 %v384, 4294901760
    %1976 = vmatpush.msra.mxu0 %v1975
    %v1977 = vand.u32 %v368, 4294901760
    %v1978 = vsub.f32 %v368, %v1977
    %v1979 = vand.u32 %v1978, 4294901760
    %1980 = vmatmul.f32.gmra.mxu0 %v1979
    %v1981 = vpop.f32.mrf.mxu0
    %v1982 = vadd.f32 %v1868, %v1981
    %v1983 = vand.u32 %v369, 4294901760
    %v1984 = vsub.f32 %v369, %v1983
    %v1985 = vand.u32 %v1984, 4294901760
    %1986 = vmatmul.f32.gmra.mxu0 %v1985
    %v1987 = vpop.f32.mrf.mxu0
    %v1988 = vadd.f32 %v1873, %v1987
    %v1989 = vand.u32 %v370, 4294901760
    %v1990 = vsub.f32 %v370, %v1989
    %v1991 = vand.u32 %v1990, 4294901760
    %1992 = vmatmul.f32.gmra.mxu0 %v1991
    %v1993 = vpop.f32.mrf.mxu0
    %v1994 = vadd.f32 %v1878, %v1993
    %v1995 = vand.u32 %v371, 4294901760
    %v1996 = vsub.f32 %v371, %v1995
    %v1997 = vand.u32 %v1996, 4294901760
    %1998 = vmatmul.f32.gmra.mxu0 %v1997
    %v1999 = vpop.f32.mrf.mxu0
    %v2000 = vadd.f32 %v1883, %v1999
    %v2001 = vand.u32 %v372, 4294901760
    %v2002 = vsub.f32 %v372, %v2001
    %v2003 = vand.u32 %v2002, 4294901760
    %2004 = vmatmul.f32.gmra.mxu0 %v2003
    %v2005 = vpop.f32.mrf.mxu0
    %v2006 = vadd.f32 %v1888, %v2005
    %v2007 = vand.u32 %v373, 4294901760
    %v2008 = vsub.f32 %v373, %v2007
    %v2009 = vand.u32 %v2008, 4294901760
    %2010 = vmatmul.f32.gmra.mxu0 %v2009
    %v2011 = vpop.f32.mrf.mxu0
    %v2012 = vadd.f32 %v1893, %v2011
    %v2013 = vand.u32 %v374, 4294901760
    %v2014 = vsub.f32 %v374, %v2013
    %v2015 = vand.u32 %v2014, 4294901760
    %2016 = vmatmul.f32.gmra.mxu0 %v2015
    %v2017 = vpop.f32.mrf.mxu0
    %v2018 = vadd.f32 %v1898, %v2017
    %v2019 = vand.u32 %v375, 4294901760
    %v2020 = vsub.f32 %v375, %v2019
    %v2021 = vand.u32 %v2020, 4294901760
    %2022 = vmatmul.f32.gmra.mxu0 %v2021
    %v2023 = vpop.f32.mrf.mxu0
    %v2024 = vadd.f32 %v1903, %v2023
    %v2025 = vand.u32 %v376, 4294901760
    %v2026 = vsub.f32 %v376, %v2025
    %v2027 = vand.u32 %v2026, 4294901760
    %2028 = vmatmul.f32.gmra.mxu0 %v2027
    %v2029 = vpop.f32.mrf.mxu0
    %v2030 = vadd.f32 %v1908, %v2029
    %v2031 = vand.u32 %v377, 4294901760
    %v2032 = vsub.f32 %v377, %v2031
    %v2033 = vand.u32 %v2032, 4294901760
    %2034 = vmatmul.f32.gmra.mxu0 %v2033
    %v2035 = vpop.f32.mrf.mxu0
    %v2036 = vadd.f32 %v1913, %v2035
    %v2037 = vand.u32 %v378, 4294901760
    %v2038 = vsub.f32 %v378, %v2037
    %v2039 = vand.u32 %v2038, 4294901760
    %2040 = vmatmul.f32.gmra.mxu0 %v2039
    %v2041 = vpop.f32.mrf.mxu0
    %v2042 = vadd.f32 %v1918, %v2041
    %v2043 = vand.u32 %v379, 4294901760
    %v2044 = vsub.f32 %v379, %v2043
    %v2045 = vand.u32 %v2044, 4294901760
    %2046 = vmatmul.f32.gmra.mxu0 %v2045
    %v2047 = vpop.f32.mrf.mxu0
    %v2048 = vadd.f32 %v1923, %v2047
    %v2049 = vand.u32 %v380, 4294901760
    %v2050 = vsub.f32 %v380, %v2049
    %v2051 = vand.u32 %v2050, 4294901760
    %2052 = vmatmul.f32.gmra.mxu0 %v2051
    %v2053 = vpop.f32.mrf.mxu0
    %v2054 = vadd.f32 %v1928, %v2053
    %v2055 = vand.u32 %v381, 4294901760
    %v2056 = vsub.f32 %v381, %v2055
    %v2057 = vand.u32 %v2056, 4294901760
    %2058 = vmatmul.f32.gmra.mxu0 %v2057
    %v2059 = vpop.f32.mrf.mxu0
    %v2060 = vadd.f32 %v1933, %v2059
    %v2061 = vand.u32 %v382, 4294901760
    %v2062 = vsub.f32 %v382, %v2061
    %v2063 = vand.u32 %v2062, 4294901760
    %2064 = vmatmul.f32.gmra.mxu0 %v2063
    %v2065 = vpop.f32.mrf.mxu0
    %v2066 = vadd.f32 %v1938, %v2065
    %v2067 = vand.u32 %v383, 4294901760
    %v2068 = vsub.f32 %v383, %v2067
    %v2069 = vand.u32 %v2068, 4294901760
    %2070 = vmatmul.f32.gmra.mxu0 %v2069
    %v2071 = vpop.f32.mrf.mxu0
    %v2072 = vadd.f32 %v1943, %v2071
    %2073 = vdwg.mxu0
    %v2074 = vand.u32 %v399, 4294901760
    %v2075 = vsub.f32 %v399, %v2074
    %v2076 = vand.u32 %v2075, 4294901760
    %2077 = vmatpush.msra.mxu0 %v2076
    %v2078 = vand.u32 %v398, 4294901760
    %v2079 = vsub.f32 %v398, %v2078
    %v2080 = vand.u32 %v2079, 4294901760
    %2081 = vmatpush.msra.mxu0 %v2080
    %v2082 = vand.u32 %v397, 4294901760
    %v2083 = vsub.f32 %v397, %v2082
    %v2084 = vand.u32 %v2083, 4294901760
    %2085 = vmatpush.msra.mxu0 %v2084
    %v2086 = vand.u32 %v396, 4294901760
    %v2087 = vsub.f32 %v396, %v2086
    %v2088 = vand.u32 %v2087, 4294901760
    %2089 = vmatpush.msra.mxu0 %v2088
    %v2090 = vand.u32 %v395, 4294901760
    %v2091 = vsub.f32 %v395, %v2090
    %v2092 = vand.u32 %v2091, 4294901760
    %2093 = vmatpush.msra.mxu0 %v2092
    %v2094 = vand.u32 %v394, 4294901760
    %v2095 = vsub.f32 %v394, %v2094
    %v2096 = vand.u32 %v2095, 4294901760
    %2097 = vmatpush.msra.mxu0 %v2096
    %v2098 = vand.u32 %v393, 4294901760
    %v2099 = vsub.f32 %v393, %v2098
    %v2100 = vand.u32 %v2099, 4294901760
    %2101 = vmatpush.msra.mxu0 %v2100
    %v2102 = vand.u32 %v392, 4294901760
    %v2103 = vsub.f32 %v392, %v2102
    %v2104 = vand.u32 %v2103, 4294901760
    %2105 = vmatpush.msra.mxu0 %v2104
    %v2106 = vand.u32 %v391, 4294901760
    %v2107 = vsub.f32 %v391, %v2106
    %v2108 = vand.u32 %v2107, 4294901760
    %2109 = vmatpush.msra.mxu0 %v2108
    %v2110 = vand.u32 %v390, 4294901760
    %v2111 = vsub.f32 %v390, %v2110
    %v2112 = vand.u32 %v2111, 4294901760
    %2113 = vmatpush.msra.mxu0 %v2112
    %v2114 = vand.u32 %v389, 4294901760
    %v2115 = vsub.f32 %v389, %v2114
    %v2116 = vand.u32 %v2115, 4294901760
    %2117 = vmatpush.msra.mxu0 %v2116
    %v2118 = vand.u32 %v388, 4294901760
    %v2119 = vsub.f32 %v388, %v2118
    %v2120 = vand.u32 %v2119, 4294901760
    %2121 = vmatpush.msra.mxu0 %v2120
    %v2122 = vand.u32 %v387, 4294901760
    %v2123 = vsub.f32 %v387, %v2122
    %v2124 = vand.u32 %v2123, 4294901760
    %2125 = vmatpush.msra.mxu0 %v2124
    %v2126 = vand.u32 %v386, 4294901760
    %v2127 = vsub.f32 %v386, %v2126
    %v2128 = vand.u32 %v2127, 4294901760
    %2129 = vmatpush.msra.mxu0 %v2128
    %v2130 = vand.u32 %v385, 4294901760
    %v2131 = vsub.f32 %v385, %v2130
    %v2132 = vand.u32 %v2131, 4294901760
    %2133 = vmatpush.msra.mxu0 %v2132
    %v2134 = vand.u32 %v384, 4294901760
    %v2135 = vsub.f32 %v384, %v2134
    %v2136 = vand.u32 %v2135, 4294901760
    %2137 = vmatpush.msra.mxu0 %v2136
    %v2138 = vand.u32 %v368, 4294901760
    %2139 = vmatmul.f32.gmra.mxu0 %v2138
    %v2140 = vpop.f32.mrf.mxu0
    %v2141 = vadd.f32 %v1982, %v2140
    %v2142 = vand.u32 %v369, 4294901760
    %2143 = vmatmul.f32.gmra.mxu0 %v2142
    %v2144 = vpop.f32.mrf.mxu0
    %v2145 = vadd.f32 %v1988, %v2144
    %v2146 = vand.u32 %v370, 4294901760
    %2147 = vmatmul.f32.gmra.mxu0 %v2146
    %v2148 = vpop.f32.mrf.mxu0
    %v2149 = vadd.f32 %v1994, %v2148
    %v2150 = vand.u32 %v371, 4294901760
    %2151 = vmatmul.f32.gmra.mxu0 %v2150
    %v2152 = vpop.f32.mrf.mxu0
    %v2153 = vadd.f32 %v2000, %v2152
    %v2154 = vand.u32 %v372, 4294901760
    %2155 = vmatmul.f32.gmra.mxu0 %v2154
    %v2156 = vpop.f32.mrf.mxu0
    %v2157 = vadd.f32 %v2006, %v2156
    %v2158 = vand.u32 %v373, 4294901760
    %2159 = vmatmul.f32.gmra.mxu0 %v2158
    %v2160 = vpop.f32.mrf.mxu0
    %v2161 = vadd.f32 %v2012, %v2160
    %v2162 = vand.u32 %v374, 4294901760
    %2163 = vmatmul.f32.gmra.mxu0 %v2162
    %v2164 = vpop.f32.mrf.mxu0
    %v2165 = vadd.f32 %v2018, %v2164
    %v2166 = vand.u32 %v375, 4294901760
    %2167 = vmatmul.f32.gmra.mxu0 %v2166
    %v2168 = vpop.f32.mrf.mxu0
    %v2169 = vadd.f32 %v2024, %v2168
    %v2170 = vand.u32 %v376, 4294901760
    %2171 = vmatmul.f32.gmra.mxu0 %v2170
    %v2172 = vpop.f32.mrf.mxu0
    %v2173 = vadd.f32 %v2030, %v2172
    %v2174 = vand.u32 %v377, 4294901760
    %2175 = vmatmul.f32.gmra.mxu0 %v2174
    %v2176 = vpop.f32.mrf.mxu0
    %v2177 = vadd.f32 %v2036, %v2176
    %v2178 = vand.u32 %v378, 4294901760
    %2179 = vmatmul.f32.gmra.mxu0 %v2178
    %v2180 = vpop.f32.mrf.mxu0
    %v2181 = vadd.f32 %v2042, %v2180
    %v2182 = vand.u32 %v379, 4294901760
    %2183 = vmatmul.f32.gmra.mxu0 %v2182
    %v2184 = vpop.f32.mrf.mxu0
    %v2185 = vadd.f32 %v2048, %v2184
    %v2186 = vand.u32 %v380, 4294901760
    %2187 = vmatmul.f32.gmra.mxu0 %v2186
    %v2188 = vpop.f32.mrf.mxu0
    %v2189 = vadd.f32 %v2054, %v2188
    %v2190 = vand.u32 %v381, 4294901760
    %2191 = vmatmul.f32.gmra.mxu0 %v2190
    %v2192 = vpop.f32.mrf.mxu0
    %v2193 = vadd.f32 %v2060, %v2192
    %v2194 = vand.u32 %v382, 4294901760
    %2195 = vmatmul.f32.gmra.mxu0 %v2194
    %v2196 = vpop.f32.mrf.mxu0
    %v2197 = vadd.f32 %v2066, %v2196
    %v2198 = vand.u32 %v383, 4294901760
    %2199 = vmatmul.f32.gmra.mxu0 %v2198
    %v2200 = vpop.f32.mrf.mxu0
    %v2201 = vadd.f32 %v2072, %v2200
    %2202 = vdwg.mxu0
    %v2203 = vand.u32 %v399, 4294901760
    %2204 = vmatpush.msra.mxu0 %v2203
    %v2205 = vand.u32 %v398, 4294901760
    %2206 = vmatpush.msra.mxu0 %v2205
    %v2207 = vand.u32 %v397, 4294901760
    %2208 = vmatpush.msra.mxu0 %v2207
    %v2209 = vand.u32 %v396, 4294901760
    %2210 = vmatpush.msra.mxu0 %v2209
    %v2211 = vand.u32 %v395, 4294901760
    %2212 = vmatpush.msra.mxu0 %v2211
    %v2213 = vand.u32 %v394, 4294901760
    %2214 = vmatpush.msra.mxu0 %v2213
    %v2215 = vand.u32 %v393, 4294901760
    %2216 = vmatpush.msra.mxu0 %v2215
    %v2217 = vand.u32 %v392, 4294901760
    %2218 = vmatpush.msra.mxu0 %v2217
    %v2219 = vand.u32 %v391, 4294901760
    %2220 = vmatpush.msra.mxu0 %v2219
    %v2221 = vand.u32 %v390, 4294901760
    %2222 = vmatpush.msra.mxu0 %v2221
    %v2223 = vand.u32 %v389, 4294901760
    %2224 = vmatpush.msra.mxu0 %v2223
    %v2225 = vand.u32 %v388, 4294901760
    %2226 = vmatpush.msra.mxu0 %v2225
    %v2227 = vand.u32 %v387, 4294901760
    %2228 = vmatpush.msra.mxu0 %v2227
    %v2229 = vand.u32 %v386, 4294901760
    %2230 = vmatpush.msra.mxu0 %v2229
    %v2231 = vand.u32 %v385, 4294901760
    %2232 = vmatpush.msra.mxu0 %v2231
    %v2233 = vand.u32 %v384, 4294901760
    %2234 = vmatpush.msra.mxu0 %v2233
    %v2235 = vand.u32 %v368, 4294901760
    %2236 = vmatmul.f32.gmra.mxu0 %v2235
    %v2237 = vpop.f32.mrf.mxu0
    %v2238 = vadd.f32 %v2141, %v2237
    %v2239 = vand.u32 %v369, 4294901760
    %2240 = vmatmul.f32.gmra.mxu0 %v2239
    %v2241 = vpop.f32.mrf.mxu0
    %v2242 = vadd.f32 %v2145, %v2241
    %v2243 = vand.u32 %v370, 4294901760
    %2244 = vmatmul.f32.gmra.mxu0 %v2243
    %v2245 = vpop.f32.mrf.mxu0
    %v2246 = vadd.f32 %v2149, %v2245
    %v2247 = vand.u32 %v371, 4294901760
    %2248 = vmatmul.f32.gmra.mxu0 %v2247
    %v2249 = vpop.f32.mrf.mxu0
    %v2250 = vadd.f32 %v2153, %v2249
    %v2251 = vand.u32 %v372, 4294901760
    %2252 = vmatmul.f32.gmra.mxu0 %v2251
    %v2253 = vpop.f32.mrf.mxu0
    %v2254 = vadd.f32 %v2157, %v2253
    %v2255 = vand.u32 %v373, 4294901760
    %2256 = vmatmul.f32.gmra.mxu0 %v2255
    %v2257 = vpop.f32.mrf.mxu0
    %v2258 = vadd.f32 %v2161, %v2257
    %v2259 = vand.u32 %v374, 4294901760
    %2260 = vmatmul.f32.gmra.mxu0 %v2259
    %v2261 = vpop.f32.mrf.mxu0
    %v2262 = vadd.f32 %v2165, %v2261
    %v2263 = vand.u32 %v375, 4294901760
    %2264 = vmatmul.f32.gmra.mxu0 %v2263
    %v2265 = vpop.f32.mrf.mxu0
    %v2266 = vadd.f32 %v2169, %v2265
    %v2267 = vand.u32 %v376, 4294901760
    %2268 = vmatmul.f32.gmra.mxu0 %v2267
    %v2269 = vpop.f32.mrf.mxu0
    %v2270 = vadd.f32 %v2173, %v2269
    %v2271 = vand.u32 %v377, 4294901760
    %2272 = vmatmul.f32.gmra.mxu0 %v2271
    %v2273 = vpop.f32.mrf.mxu0
    %v2274 = vadd.f32 %v2177, %v2273
    %v2275 = vand.u32 %v378, 4294901760
    %2276 = vmatmul.f32.gmra.mxu0 %v2275
    %v2277 = vpop.f32.mrf.mxu0
    %v2278 = vadd.f32 %v2181, %v2277
    %v2279 = vand.u32 %v379, 4294901760
    %2280 = vmatmul.f32.gmra.mxu0 %v2279
    %v2281 = vpop.f32.mrf.mxu0
    %v2282 = vadd.f32 %v2185, %v2281
    %v2283 = vand.u32 %v380, 4294901760
    %2284 = vmatmul.f32.gmra.mxu0 %v2283
    %v2285 = vpop.f32.mrf.mxu0
    %v2286 = vadd.f32 %v2189, %v2285
    %v2287 = vand.u32 %v381, 4294901760
    %2288 = vmatmul.f32.gmra.mxu0 %v2287
    %v2289 = vpop.f32.mrf.mxu0
    %v2290 = vadd.f32 %v2193, %v2289
    %v2291 = vand.u32 %v382, 4294901760
    %2292 = vmatmul.f32.gmra.mxu0 %v2291
    %v2293 = vpop.f32.mrf.mxu0
    %v2294 = vadd.f32 %v2197, %v2293
    %v2295 = vand.u32 %v383, 4294901760
    %2296 = vmatmul.f32.gmra.mxu0 %v2295
    %v2297 = vpop.f32.mrf.mxu0
    %v2298 = vadd.f32 %v2201, %v2297
    %2299 = vdwg.mxu0
    %v2300 = vld [vmem:[%s3] sm:$0xff]
    %v2301 = vld [vmem:[%s3 + $0x8] sm:$0xff]
    %v2302 = vld [vmem:[%s3 + $0x10] sm:$0xff]
    %v2303 = vld [vmem:[%s3 + $0x18] sm:$0xff]
    %v2304 = vld [vmem:[%s3 + $0x20] sm:$0xff]
    %v2305 = vld [vmem:[%s3 + $0x28] sm:$0xff]
    %v2306 = vld [vmem:[%s3 + $0x30] sm:$0xff]
    %v2307 = vld [vmem:[%s3 + $0x38] sm:$0xff]
    %v2308 = vld [vmem:[%s3 + $0x40] sm:$0xff]
    %v2309 = vld [vmem:[%s3 + $0x48] sm:$0xff]
    %v2310 = vld [vmem:[%s3 + $0x50] sm:$0xff]
    %v2311 = vld [vmem:[%s3 + $0x58] sm:$0xff]
    %v2312 = vld [vmem:[%s3 + $0x60] sm:$0xff]
    %v2313 = vld [vmem:[%s3 + $0x68] sm:$0xff]
    %v2314 = vld [vmem:[%s3 + $0x70] sm:$0xff]
    %v2315 = vld [vmem:[%s3 + $0x78] sm:$0xff]
    %2317 = vset.pattern.permute.xlu0 0
    %2318 = vperm.xlu0 %2317, %v2300
    %v2319 = vpop.permute.xlu0 %2318
    %2322 = vset.pattern.permute.xlu0 0
    %2323 = vperm.xlu0 %2322, %v2301
    %v2324 = vpop.permute.xlu0 %2323
    %2327 = vset.pattern.permute.xlu0 0
    %2328 = vperm.xlu0 %2327, %v2302
    %v2329 = vpop.permute.xlu0 %2328
    %2332 = vset.pattern.permute.xlu0 0
    %2333 = vperm.xlu0 %2332, %v2303
    %v2334 = vpop.permute.xlu0 %2333
    %2337 = vset.pattern.permute.xlu0 0
    %2338 = vperm.xlu0 %2337, %v2304
    %v2339 = vpop.permute.xlu0 %2338
    %2342 = vset.pattern.permute.xlu0 0
    %2343 = vperm.xlu0 %2342, %v2305
    %v2344 = vpop.permute.xlu0 %2343
    %2347 = vset.pattern.permute.xlu0 0
    %2348 = vperm.xlu0 %2347, %v2306
    %v2349 = vpop.permute.xlu0 %2348
    %2352 = vset.pattern.permute.xlu0 0
    %2353 = vperm.xlu0 %2352, %v2307
    %v2354 = vpop.permute.xlu0 %2353
    %2357 = vset.pattern.permute.xlu0 0
    %2358 = vperm.xlu0 %2357, %v2308
    %v2359 = vpop.permute.xlu0 %2358
    %2362 = vset.pattern.permute.xlu0 0
    %2363 = vperm.xlu0 %2362, %v2309
    %v2364 = vpop.permute.xlu0 %2363
    %2367 = vset.pattern.permute.xlu0 0
    %2368 = vperm.xlu0 %2367, %v2310
    %v2369 = vpop.permute.xlu0 %2368
    %2372 = vset.pattern.permute.xlu0 0
    %2373 = vperm.xlu0 %2372, %v2311
    %v2374 = vpop.permute.xlu0 %2373
    %2377 = vset.pattern.permute.xlu0 0
    %2378 = vperm.xlu0 %2377, %v2312
    %v2379 = vpop.permute.xlu0 %2378
    %2382 = vset.pattern.permute.xlu0 0
    %2383 = vperm.xlu0 %2382, %v2313
    %v2384 = vpop.permute.xlu0 %2383
    %2387 = vset.pattern.permute.xlu0 0
    %2388 = vperm.xlu0 %2387, %v2314
    %v2389 = vpop.permute.xlu0 %2388
    %2392 = vset.pattern.permute.xlu0 0
    %2393 = vperm.xlu0 %2392, %v2315
    %v2394 = vpop.permute.xlu0 %2393
    %v2396 = vmul.f32 %v2238, %v2319
    %v2397 = vmul.f32 %v2242, %v2324
    %v2398 = vmul.f32 %v2246, %v2329
    %v2399 = vmul.f32 %v2250, %v2334
    %v2400 = vmul.f32 %v2254, %v2339
    %v2401 = vmul.f32 %v2258, %v2344
    %v2402 = vmul.f32 %v2262, %v2349
    %v2403 = vmul.f32 %v2266, %v2354
    %v2404 = vmul.f32 %v2270, %v2359
    %v2405 = vmul.f32 %v2274, %v2364
    %v2406 = vmul.f32 %v2278, %v2369
    %v2407 = vmul.f32 %v2282, %v2374
    %v2408 = vmul.f32 %v2286, %v2379
    %v2409 = vmul.f32 %v2290, %v2384
    %v2410 = vmul.f32 %v2294, %v2389
    %v2411 = vmul.f32 %v2298, %v2394
    %2412 = vst [vmem:[#allocation2] sm:$0xff] %v2396
    %2413 = vst [vmem:[#allocation2 + $0x8] sm:$0xff] %v2397
    %2414 = vst [vmem:[#allocation2 + $0x10] sm:$0xff] %v2398
    %2415 = vst [vmem:[#allocation2 + $0x18] sm:$0xff] %v2399
    %2416 = vst [vmem:[#allocation2 + $0x20] sm:$0xff] %v2400
    %2417 = vst [vmem:[#allocation2 + $0x28] sm:$0xff] %v2401
    %2418 = vst [vmem:[#allocation2 + $0x30] sm:$0xff] %v2402
    %2419 = vst [vmem:[#allocation2 + $0x38] sm:$0xff] %v2403
    %2420 = vst [vmem:[#allocation2 + $0x40] sm:$0xff] %v2404
    %2421 = vst [vmem:[#allocation2 + $0x48] sm:$0xff] %v2405
    %2422 = vst [vmem:[#allocation2 + $0x50] sm:$0xff] %v2406
    %2423 = vst [vmem:[#allocation2 + $0x58] sm:$0xff] %v2407
    %2424 = vst [vmem:[#allocation2 + $0x60] sm:$0xff] %v2408
    %2425 = vst [vmem:[#allocation2 + $0x68] sm:$0xff] %v2409
    %2426 = vst [vmem:[#allocation2 + $0x70] sm:$0xff] %v2410
    %2427 = vst [vmem:[#allocation2 + $0x78] sm:$0xff] %v2411
    // Predicated region
    $region34: #{tpu_custom_call.1} parent=1 // pred_check
      _
    $region35: #{tpu_custom_call.1} parent=1 // pred_check_branch
      %2429 = sbr.rel (0) target = $region37
    $region36: #{tpu_custom_call.1} parent=1 // pred_region
      %2431 = vsyncadd [#allocation3], 0
      %s2432 = sshll.u32 [#allocation2], 4
      %s2433 = int_to_ptr.vmem [resolvable:$true] %s2432
      %s2434 = sshll.u32 %s8, 4
      %s2435 = int_to_ptr.hbm [resolvable:$true] %s2434
      %2440 = dma.vmem_to_hbm [thread:$0]  %s2433, 2048, %s2435, [#allocation3], 128, 128, 8
    $region37: #{tpu_custom_call.1} parent=1 // pred_fallthru
      _
    // Predicated region
    $region38: #{tpu_custom_call.1} parent=1 // pred_check
      _
    $region39: #{tpu_custom_call.1} parent=1 // pred_check_branch
      %2442 = sbr.rel (0) target = $region41
    $region40: #{tpu_custom_call.1} parent=1 // pred_region
      %2444 = dma.done [#allocation3], 2048
    $region41: #{tpu_custom_call.1} parent=1 // pred_fallthru
      _
    %2445 = vsyncpa [#allocation3], 1

</llo_original>
